<compile_context>
chip_gen: v7x
topology: tpu7x:2x2x1
jax: 0.10.0
libtpu: 0.0.40
codegen_flags: <defaults>
</compile_context>

<pallas_src>
import jax
import jax.numpy as jnp
from jax import lax
from jax.experimental import pallas as pl
from jax.experimental.pallas import tpu as pltpu


# ----------------------------- model dims -----------------------------------
BATCH = 2
SEQ = 8                        # tgt_len
EMBED = 32                     # embed_dim
VALUE = 32                     # value_dim
HEADS = 4                      # num_heads
KEY_DIM = EMBED // HEADS       # 8
HEAD_DIM = VALUE // HEADS      # 8
SCALING = KEY_DIM ** (-0.5)
EPS = 1e-5                     # config.layernorm_eps

BT = BATCH * SEQ               # 16 (flattened batch*time rows)
QKVG = 2 * EMBED + 2 * VALUE   # 128 fused projection width
QK_W = 2 * EMBED               # 64  (q|k lanes, rotated together)


# ----------------------------- Pallas kernel --------------------------------
def msr_kernel(x_ref, wqkvg_ref, rot_ref, sin_ref, cos_ref, mask_ref, wo_ref,
               o_ref, out_sc):
    x = x_ref[...]                                               # (BT, E)

    # single fused projection: columns = [ q | k*scaling | v | g ]  -> (BT, 128)
    qkvg = jnp.dot(x, wqkvg_ref[...], preferred_element_type=jnp.float32)

    v = qkvg[:, 2 * EMBED:2 * EMBED + VALUE]                     # (BT, V)
    g = qkvg[:, 2 * EMBED + VALUE:]                              # (BT, V)

    # theta_shift for q and k of all heads in ONE rotation matmul:
    # rotate_every_two expressed as a fixed (2E, 2E) permutation/sign matrix.
    qk_cols = qkvg[:, :QK_W]                                     # (BT, 2E)
    qk_rot = (qk_cols * cos_ref[...]
              + jnp.dot(qk_cols, rot_ref[...],
                        preferred_element_type=jnp.float32) * sin_ref[...])
    qr = qk_rot[:, :EMBED]                                       # (BT, E)
    kr = qk_rot[:, EMBED:]                                       # (BT, E)

    for h in range(HEADS):                                       # static unroll
        qh = qr[:, h * KEY_DIM:(h + 1) * KEY_DIM]                # (BT, KD)
        kh = kr[:, h * KEY_DIM:(h + 1) * KEY_DIM]
        vh = v[:, h * HEAD_DIM:(h + 1) * HEAD_DIM]               # (BT, HD)

        # One (BT, BT) retention matrix per head covers the whole batch:
        # cross-batch entries are zeroed by the block-diagonal mask, so the
        # row-sum normalization and the @v contraction stay per-batch correct.
        qk = lax.dot_general(qh, kh, (((1,), (1,)), ((), ())),
                             preferred_element_type=jnp.float32)  # (BT, BT)
        qk = qk * mask_ref[h]
        denom = jnp.maximum(jnp.abs(jnp.sum(qk, axis=-1, keepdims=True)), 1.0)
        qk = qk / denom

        oh = jnp.dot(qk, vh, preferred_element_type=jnp.float32)  # (BT, HD)

        # group_norm: RMSNorm over head_dim, no affine
        ms = jnp.mean(oh * oh, axis=-1, keepdims=True)
        out_sc[:, h * HEAD_DIM:(h + 1) * HEAD_DIM] = oh * lax.rsqrt(ms + EPS)

    out = out_sc[...]                                            # (BT, V)

    # swish gate + output projection
    gated = (g * jax.nn.sigmoid(g)) * out
    o_ref[...] = jnp.dot(gated, wo_ref[...],
                         preferred_element_type=jnp.float32).astype(o_ref.dtype)


# ----------------------------- one-time prep ---------------------------------
def prepare_params(wq, wk, wv, wg, wo, sin, cos, mask):
    """Fuse/pre-transpose weights and pre-tile rel-pos tensors (called once)."""
    # fused, pre-transposed projection weight; SCALING folded into the k block
    w_qkvg = jnp.concatenate([wq.T, wk.T * SCALING, wv.T, wg.T], axis=1)  # (E,128)
    wo_t = wo.T                                                           # (V, E)

    # rotate_every_two as a (2E, 2E) matrix: out[2i]=-in[2i+1], out[2i+1]=in[2i]
    ev = jnp.arange(0, QK_W, 2)
    od = ev + 1
    rot = jnp.zeros((QK_W, QK_W), jnp.float32)
    rot = rot.at[od, ev].set(-1.0).at[ev, od].set(1.0)

    # sin/cos tiled across all q|k head blocks (lanes) and across batch (rows)
    sin2 = jnp.tile(sin, (BATCH, 2 * HEADS))                              # (BT, 2E)
    cos2 = jnp.tile(cos, (BATCH, 2 * HEADS))

    # decay mask expanded to block-diagonal over the flattened batch axis
    eye_b = jnp.eye(BATCH, dtype=mask.dtype)
    mask_bt = jnp.einsum('bc,hij->hbicj', eye_b, mask).reshape(HEADS, BT, BT)

    return w_qkvg, rot, sin2, cos2, mask_bt, wo_t


# ----------------------------- forward wrapper -------------------------------
@jax.jit
def multi_scale_retention(x, w_qkvg, rot, sin2, cos2, mask_bt, wo_t):
    B, T, E = x.shape
    x2 = x.reshape(B * T, E)

    full2 = lambda i: (0, 0)
    grid_spec = pltpu.PrefetchScalarGridSpec(
        num_scalar_prefetch=0,
        grid=(1,),                                  # whole batch in one step
        in_specs=[
            pl.BlockSpec((BT, EMBED), full2),               # x  (flattened)
            pl.BlockSpec((EMBED, QKVG), full2),             # fused qkvg weight
            pl.BlockSpec((QK_W, QK_W), full2),              # rotation matrix
            pl.BlockSpec((BT, QK_W), full2),                # sin (tiled)
            pl.BlockSpec((BT, QK_W), full2),                # cos (tiled)
            pl.BlockSpec((HEADS, BT, BT), lambda i: (0, 0, 0)),  # decay mask
            pl.BlockSpec((VALUE, EMBED), full2),            # out proj weight
        ],
        out_specs=pl.BlockSpec((BT, EMBED), full2),
        scratch_shapes=[pltpu.VMEM((BT, VALUE), jnp.float32)],
    )

    y = pl.pallas_call(
        msr_kernel,
        out_shape=jax.ShapeDtypeStruct((BT, EMBED), jnp.float32),
        grid_spec=grid_spec,
        compiler_params=pltpu.CompilerParams(
            dimension_semantics=("arbitrary",)),    # tiny workload: no TC split
    )(x2, w_qkvg, rot, sin2, cos2, mask_bt, wo_t)

    return y.reshape(B, T, E)


# ----------------------------- pure-JAX reference ---------------------------
def reference(x, wq, wk, wv, wg, wo, sin, cos, mask):
    B, T, E = x.shape
    q = x @ wq.T
    k = (x @ wk.T) * SCALING
    v = x @ wv.T
    g = x @ wg.T
    q = q.reshape(B, T, HEADS, KEY_DIM).transpose(0, 2, 1, 3)
    k = k.reshape(B, T, HEADS, KEY_DIM).transpose(0, 2, 1, 3)

    def rotate_every_two(t):
        t1 = t[..., 0::2]
        t2 = t[..., 1::2]
        return jnp.stack([-t2, t1], axis=-1).reshape(t.shape)

    qr = q * cos + rotate_every_two(q) * sin
    kr = k * cos + rotate_every_two(k) * sin
    vr = v.reshape(B, T, HEADS, HEAD_DIM).transpose(0, 2, 1, 3)

    qk = jnp.einsum('bhqd,bhkd->bhqk', qr, kr) * mask
    denom = jnp.maximum(jnp.abs(qk.sum(-1, keepdims=True)), 1.0)
    qk = qk / denom
    out = jnp.einsum('bhqk,bhkd->bhqd', qk, vr)
    out = out.transpose(0, 2, 1, 3)                                # (B,T,H,hd)
    out = out * lax.rsqrt(jnp.mean(out * out, -1, keepdims=True) + EPS)
    out = out.reshape(B, T, HEADS * HEAD_DIM)
    out = (g * jax.nn.sigmoid(g)) * out
    return out @ wo.T


# ----------------------------- setup helpers --------------------------------
def xavier_uniform(key, out_f, in_f, gain):
    limit = gain * (6.0 / (in_f + out_f)) ** 0.5
    return jax.random.uniform(key, (out_f, in_f), jnp.float32, -limit, limit)


def make_rel_pos(seq_len):
    """Mirror RetNetRelPos.forward for the parallel path."""
    angle = 1.0 / (10000.0 ** jnp.linspace(0.0, 1.0, KEY_DIM // 2))
    angle = jnp.repeat(angle, 2)                                   # duplicate pairs
    decay = jnp.log(1.0 - 2.0 ** (-5.0 - jnp.arange(HEADS, dtype=jnp.float32)))
    index = jnp.arange(seq_len, dtype=jnp.float32)
    sin = jnp.sin(index[:, None] * angle[None, :])
    cos = jnp.cos(index[:, None] * angle[None, :])
    tril = jnp.tril(jnp.ones((seq_len, seq_len), jnp.float32)).astype(bool)
    diff = index[:, None] - index[None, :]
    masked = jnp.where(tril, diff, jnp.inf)
    mask = jnp.exp(masked * decay[:, None, None])
    mask = jnp.nan_to_num(mask)
    mask = mask / jnp.sqrt(mask.sum(-1, keepdims=True))
    return sin, cos, mask


# ----------------------------- main ------------------------------------------
if __name__ == "__main__":
    key = jax.random.PRNGKey(0)
    kx, kq, kk, kv, kg, ko = jax.random.split(key, 6)

    x = jax.random.normal(kx, (BATCH, SEQ, EMBED), jnp.float32)

    gain = 2.0 ** (-2.5)
    wq = xavier_uniform(kq, EMBED, EMBED, gain)
    wk = xavier_uniform(kk, EMBED, EMBED, gain)
    wv = xavier_uniform(kv, VALUE, EMBED, gain)
    wg = xavier_uniform(kg, VALUE, EMBED, gain)
    wo = xavier_uniform(ko, EMBED, VALUE, 1.0)

    sin, cos, mask = make_rel_pos(SEQ)

    # one-time fusion / pre-tiling (outside the per-call hot path)
    params = prepare_params(wq, wk, wv, wg, wo, sin, cos, mask)
    params = jax.tree_util.tree_map(jax.block_until_ready, params)

    out = multi_scale_retention(x, *params)
    out = jax.block_until_ready(out)

    ref = reference(x, wq, wk, wv, wg, wo, sin, cos, mask)
    assert out.shape == (BATCH, SEQ, EMBED)
    assert jnp.allclose(out, ref, atol=1e-4, rtol=1e-4), \
        f"max err {jnp.max(jnp.abs(out - ref))}"

    # TODO(synk): recurrent_forward / chunk_recurrent_forward branches are not
    # implemented; only the parallel (training) forward path is kernelized.
    print("KERNEL_OK")
</pallas_src>

<mosaic_0001>
module attributes {stable_mosaic.version = 11 : i64} {
  func.func @msr_kernel(%arg0: i32, %arg1: memref<16x32xf32, #tpu.memory_space<vmem>>, %arg2: memref<32x128xf32, #tpu.memory_space<vmem>>, %arg3: memref<64x64xf32, #tpu.memory_space<vmem>>, %arg4: memref<16x64xf32, #tpu.memory_space<vmem>>, %arg5: memref<16x64xf32, #tpu.memory_space<vmem>>, %arg6: memref<4x16x16xf32, #tpu.memory_space<vmem>>, %arg7: memref<32x32xf32, #tpu.memory_space<vmem>>, %arg8: memref<16x32xf32, #tpu.memory_space<vmem>>, %arg9: memref<16x32xf32, #tpu.memory_space<vmem>>) attributes {dimension_semantics = [#tpu.dimension_semantics<arbitrary>], iteration_bounds = array<i64: 1>, scalar_prefetch = 0 : i64, scratch_operands = 1 : i64, tpu.core_type = #tpu.core_type<tc>, window_params = [{pipeline_mode = #tpu.pipeline_mode<synchronous>, transform_indices = @transform_0, window_bounds = array<i64: 16, 32>}, {pipeline_mode = #tpu.pipeline_mode<synchronous>, transform_indices = @transform_1, window_bounds = array<i64: 32, 128>}, {pipeline_mode = #tpu.pipeline_mode<synchronous>, transform_indices = @transform_2, window_bounds = array<i64: 64, 64>}, {pipeline_mode = #tpu.pipeline_mode<synchronous>, transform_indices = @transform_3, window_bounds = array<i64: 16, 64>}, {pipeline_mode = #tpu.pipeline_mode<synchronous>, transform_indices = @transform_4, window_bounds = array<i64: 16, 64>}, {pipeline_mode = #tpu.pipeline_mode<synchronous>, transform_indices = @transform_5, window_bounds = array<i64: 4, 16, 16>}, {pipeline_mode = #tpu.pipeline_mode<synchronous>, transform_indices = @transform_6, window_bounds = array<i64: 32, 32>}, {pipeline_mode = #tpu.pipeline_mode<synchronous>, transform_indices = @transform_7, window_bounds = array<i64: 16, 32>}]} {
    %c0 = arith.constant 0 : index
    %c0_0 = arith.constant 0 : index
    %0 = vector.load %arg1[%c0, %c0_0] : memref<16x32xf32, #tpu.memory_space<vmem>>, vector<16x32xf32>
    %c0_1 = arith.constant 0 : index
    %c0_2 = arith.constant 0 : index
    %1 = vector.load %arg2[%c0_1, %c0_2] : memref<32x128xf32, #tpu.memory_space<vmem>>, vector<32x128xf32>
    %cst = arith.constant dense<0.000000e+00> : vector<16x128xf32>
    %2 = tpu.matmul %0, %1, %cst {dimension_numbers = #tpu.dot_dimension_numbers<[1], [0], [0], [1], [0, 0, 1, 1], [], []>} : vector<16x32xf32>, vector<32x128xf32>, vector<16x128xf32> -> vector<16x128xf32>
    %3 = vector.extract_strided_slice %2 {offsets = [0, 64], sizes = [16, 32], strides = [1, 1]} : vector<16x128xf32> to vector<16x32xf32>
    %4 = vector.extract_strided_slice %2 {offsets = [0, 96], sizes = [16, 32], strides = [1, 1]} : vector<16x128xf32> to vector<16x32xf32>
    %5 = vector.extract_strided_slice %2 {offsets = [0, 0], sizes = [16, 64], strides = [1, 1]} : vector<16x128xf32> to vector<16x64xf32>
    %c0_3 = arith.constant 0 : index
    %c0_4 = arith.constant 0 : index
    %6 = vector.load %arg5[%c0_3, %c0_4] : memref<16x64xf32, #tpu.memory_space<vmem>>, vector<16x64xf32>
    %7 = arith.mulf %5, %6 : vector<16x64xf32>
    %c0_5 = arith.constant 0 : index
    %c0_6 = arith.constant 0 : index
    %8 = vector.load %arg3[%c0_5, %c0_6] : memref<64x64xf32, #tpu.memory_space<vmem>>, vector<64x64xf32>
    %cst_7 = arith.constant dense<0.000000e+00> : vector<16x64xf32>
    %9 = tpu.matmul %5, %8, %cst_7 {dimension_numbers = #tpu.dot_dimension_numbers<[1], [0], [0], [1], [0, 0, 1, 1], [], []>} : vector<16x64xf32>, vector<64x64xf32>, vector<16x64xf32> -> vector<16x64xf32>
    %c0_8 = arith.constant 0 : index
    %c0_9 = arith.constant 0 : index
    %10 = vector.load %arg4[%c0_8, %c0_9] : memref<16x64xf32, #tpu.memory_space<vmem>>, vector<16x64xf32>
    %11 = arith.mulf %9, %10 : vector<16x64xf32>
    %12 = arith.addf %7, %11 : vector<16x64xf32>
    %13 = vector.extract_strided_slice %12 {offsets = [0, 0], sizes = [16, 32], strides = [1, 1]} : vector<16x64xf32> to vector<16x32xf32>
    %14 = vector.extract_strided_slice %12 {offsets = [0, 32], sizes = [16, 32], strides = [1, 1]} : vector<16x64xf32> to vector<16x32xf32>
    %15 = vector.extract_strided_slice %13 {offsets = [0, 0], sizes = [16, 8], strides = [1, 1]} : vector<16x32xf32> to vector<16x8xf32>
    %16 = vector.extract_strided_slice %14 {offsets = [0, 0], sizes = [16, 8], strides = [1, 1]} : vector<16x32xf32> to vector<16x8xf32>
    %17 = vector.extract_strided_slice %3 {offsets = [0, 0], sizes = [16, 8], strides = [1, 1]} : vector<16x32xf32> to vector<16x8xf32>
    %cst_10 = arith.constant dense<0.000000e+00> : vector<16x16xf32>
    %18 = tpu.matmul %15, %16, %cst_10 {dimension_numbers = #tpu.dot_dimension_numbers<[1], [1], [0], [0], [0, 0, 1, 0], [], []>} : vector<16x8xf32>, vector<16x8xf32>, vector<16x16xf32> -> vector<16x16xf32>
    %c0_11 = arith.constant 0 : index
    %c0_12 = arith.constant 0 : index
    %c0_13 = arith.constant 0 : index
    %19 = vector.load %arg6[%c0_11, %c0_12, %c0_13] : memref<4x16x16xf32, #tpu.memory_space<vmem>>, vector<1x16x16xf32>
    %20 = vector.shape_cast %19 : vector<1x16x16xf32> to vector<16x16xf32>
    %21 = arith.mulf %18, %20 : vector<16x16xf32>
    %cst_14 = arith.constant dense<0.000000e+00> : vector<16xf32>
    %22 = vector.multi_reduction <add>, %21, %cst_14 [1] : vector<16x16xf32> to vector<16xf32>
    %23 = vector.shape_cast %22 : vector<16xf32> to vector<16x1xf32>
    %24 = math.absf %23 : vector<16x1xf32>
    %cst_15 = arith.constant 1.000000e+00 : f32
    %25 = vector.broadcast %cst_15 : f32 to vector<16x1xf32>
    %26 = arith.maximumf %24, %25 : vector<16x1xf32>
    %27 = vector.broadcast %26 : vector<16x1xf32> to vector<16x16xf32>
    %28 = arith.divf %21, %27 : vector<16x16xf32>
    %cst_16 = arith.constant dense<0.000000e+00> : vector<16x8xf32>
    %29 = tpu.matmul %28, %17, %cst_16 {dimension_numbers = #tpu.dot_dimension_numbers<[1], [0], [0], [1], [0, 0, 1, 1], [], []>} : vector<16x16xf32>, vector<16x8xf32>, vector<16x8xf32> -> vector<16x8xf32>
    %30 = arith.mulf %29, %29 : vector<16x8xf32>
    %cst_17 = arith.constant dense<0.000000e+00> : vector<16xf32>
    %31 = vector.multi_reduction <add>, %30, %cst_17 [1] : vector<16x8xf32> to vector<16xf32>
    %32 = vector.shape_cast %31 : vector<16xf32> to vector<16x1xf32>
    %cst_18 = arith.constant 8.000000e+00 : f32
    %33 = vector.broadcast %cst_18 : f32 to vector<16x1xf32>
    %34 = arith.divf %32, %33 : vector<16x1xf32>
    %cst_19 = arith.constant 9.99999974E-6 : f32
    %35 = vector.broadcast %cst_19 : f32 to vector<16x1xf32>
    %36 = arith.addf %34, %35 : vector<16x1xf32>
    %37 = math.rsqrt %36 : vector<16x1xf32>
    %38 = vector.broadcast %37 : vector<16x1xf32> to vector<16x8xf32>
    %39 = arith.mulf %29, %38 : vector<16x8xf32>
    %c0_20 = arith.constant 0 : index
    %c0_21 = arith.constant 0 : index
    %40 = vector.load %arg9[%c0_20, %c0_21] : memref<16x32xf32, #tpu.memory_space<vmem>>, vector<16x8xf32>
    tpu.vector_store %arg9[%c0_20, %c0_21], %39 {strides = array<i32>} : memref<16x32xf32, #tpu.memory_space<vmem>>, vector<16x8xf32>,
    %41 = vector.extract_strided_slice %13 {offsets = [0, 8], sizes = [16, 8], strides = [1, 1]} : vector<16x32xf32> to vector<16x8xf32>
    %42 = vector.extract_strided_slice %14 {offsets = [0, 8], sizes = [16, 8], strides = [1, 1]} : vector<16x32xf32> to vector<16x8xf32>
    %43 = vector.extract_strided_slice %3 {offsets = [0, 8], sizes = [16, 8], strides = [1, 1]} : vector<16x32xf32> to vector<16x8xf32>
    %cst_22 = arith.constant dense<0.000000e+00> : vector<16x16xf32>
    %44 = tpu.matmul %41, %42, %cst_22 {dimension_numbers = #tpu.dot_dimension_numbers<[1], [1], [0], [0], [0, 0, 1, 0], [], []>} : vector<16x8xf32>, vector<16x8xf32>, vector<16x16xf32> -> vector<16x16xf32>
    %c1 = arith.constant 1 : index
    %c0_23 = arith.constant 0 : index
    %c0_24 = arith.constant 0 : index
    %45 = vector.load %arg6[%c1, %c0_23, %c0_24] : memref<4x16x16xf32, #tpu.memory_space<vmem>>, vector<1x16x16xf32>
    %46 = vector.shape_cast %45 : vector<1x16x16xf32> to vector<16x16xf32>
    %47 = arith.mulf %44, %46 : vector<16x16xf32>
    %cst_25 = arith.constant dense<0.000000e+00> : vector<16xf32>
    %48 = vector.multi_reduction <add>, %47, %cst_25 [1] : vector<16x16xf32> to vector<16xf32>
    %49 = vector.shape_cast %48 : vector<16xf32> to vector<16x1xf32>
    %50 = math.absf %49 : vector<16x1xf32>
    %cst_26 = arith.constant 1.000000e+00 : f32
    %51 = vector.broadcast %cst_26 : f32 to vector<16x1xf32>
    %52 = arith.maximumf %50, %51 : vector<16x1xf32>
    %53 = vector.broadcast %52 : vector<16x1xf32> to vector<16x16xf32>
    %54 = arith.divf %47, %53 : vector<16x16xf32>
    %cst_27 = arith.constant dense<0.000000e+00> : vector<16x8xf32>
    %55 = tpu.matmul %54, %43, %cst_27 {dimension_numbers = #tpu.dot_dimension_numbers<[1], [0], [0], [1], [0, 0, 1, 1], [], []>} : vector<16x16xf32>, vector<16x8xf32>, vector<16x8xf32> -> vector<16x8xf32>
    %56 = arith.mulf %55, %55 : vector<16x8xf32>
    %cst_28 = arith.constant dense<0.000000e+00> : vector<16xf32>
    %57 = vector.multi_reduction <add>, %56, %cst_28 [1] : vector<16x8xf32> to vector<16xf32>
    %58 = vector.shape_cast %57 : vector<16xf32> to vector<16x1xf32>
    %cst_29 = arith.constant 8.000000e+00 : f32
    %59 = vector.broadcast %cst_29 : f32 to vector<16x1xf32>
    %60 = arith.divf %58, %59 : vector<16x1xf32>
    %cst_30 = arith.constant 9.99999974E-6 : f32
    %61 = vector.broadcast %cst_30 : f32 to vector<16x1xf32>
    %62 = arith.addf %60, %61 : vector<16x1xf32>
    %63 = math.rsqrt %62 : vector<16x1xf32>
    %64 = vector.broadcast %63 : vector<16x1xf32> to vector<16x8xf32>
    %65 = arith.mulf %55, %64 : vector<16x8xf32>
    %c0_31 = arith.constant 0 : index
    %c8 = arith.constant 8 : index
    %66 = vector.load %arg9[%c0_31, %c8] : memref<16x32xf32, #tpu.memory_space<vmem>>, vector<16x8xf32>
    tpu.vector_store %arg9[%c0_31, %c8], %65 {strides = array<i32>} : memref<16x32xf32, #tpu.memory_space<vmem>>, vector<16x8xf32>,
    %67 = vector.extract_strided_slice %13 {offsets = [0, 16], sizes = [16, 8], strides = [1, 1]} : vector<16x32xf32> to vector<16x8xf32>
    %68 = vector.extract_strided_slice %14 {offsets = [0, 16], sizes = [16, 8], strides = [1, 1]} : vector<16x32xf32> to vector<16x8xf32>
    %69 = vector.extract_strided_slice %3 {offsets = [0, 16], sizes = [16, 8], strides = [1, 1]} : vector<16x32xf32> to vector<16x8xf32>
    %cst_32 = arith.constant dense<0.000000e+00> : vector<16x16xf32>
    %70 = tpu.matmul %67, %68, %cst_32 {dimension_numbers = #tpu.dot_dimension_numbers<[1], [1], [0], [0], [0, 0, 1, 0], [], []>} : vector<16x8xf32>, vector<16x8xf32>, vector<16x16xf32> -> vector<16x16xf32>
    %c2 = arith.constant 2 : index
    %c0_33 = arith.constant 0 : index
    %c0_34 = arith.constant 0 : index
    %71 = vector.load %arg6[%c2, %c0_33, %c0_34] : memref<4x16x16xf32, #tpu.memory_space<vmem>>, vector<1x16x16xf32>
    %72 = vector.shape_cast %71 : vector<1x16x16xf32> to vector<16x16xf32>
    %73 = arith.mulf %70, %72 : vector<16x16xf32>
    %cst_35 = arith.constant dense<0.000000e+00> : vector<16xf32>
    %74 = vector.multi_reduction <add>, %73, %cst_35 [1] : vector<16x16xf32> to vector<16xf32>
    %75 = vector.shape_cast %74 : vector<16xf32> to vector<16x1xf32>
    %76 = math.absf %75 : vector<16x1xf32>
    %cst_36 = arith.constant 1.000000e+00 : f32
    %77 = vector.broadcast %cst_36 : f32 to vector<16x1xf32>
    %78 = arith.maximumf %76, %77 : vector<16x1xf32>
    %79 = vector.broadcast %78 : vector<16x1xf32> to vector<16x16xf32>
    %80 = arith.divf %73, %79 : vector<16x16xf32>
    %cst_37 = arith.constant dense<0.000000e+00> : vector<16x8xf32>
    %81 = tpu.matmul %80, %69, %cst_37 {dimension_numbers = #tpu.dot_dimension_numbers<[1], [0], [0], [1], [0, 0, 1, 1], [], []>} : vector<16x16xf32>, vector<16x8xf32>, vector<16x8xf32> -> vector<16x8xf32>
    %82 = arith.mulf %81, %81 : vector<16x8xf32>
    %cst_38 = arith.constant dense<0.000000e+00> : vector<16xf32>
    %83 = vector.multi_reduction <add>, %82, %cst_38 [1] : vector<16x8xf32> to vector<16xf32>
    %84 = vector.shape_cast %83 : vector<16xf32> to vector<16x1xf32>
    %cst_39 = arith.constant 8.000000e+00 : f32
    %85 = vector.broadcast %cst_39 : f32 to vector<16x1xf32>
    %86 = arith.divf %84, %85 : vector<16x1xf32>
    %cst_40 = arith.constant 9.99999974E-6 : f32
    %87 = vector.broadcast %cst_40 : f32 to vector<16x1xf32>
    %88 = arith.addf %86, %87 : vector<16x1xf32>
    %89 = math.rsqrt %88 : vector<16x1xf32>
    %90 = vector.broadcast %89 : vector<16x1xf32> to vector<16x8xf32>
    %91 = arith.mulf %81, %90 : vector<16x8xf32>
    %c0_41 = arith.constant 0 : index
    %c16 = arith.constant 16 : index
    %92 = vector.load %arg9[%c0_41, %c16] : memref<16x32xf32, #tpu.memory_space<vmem>>, vector<16x8xf32>
    tpu.vector_store %arg9[%c0_41, %c16], %91 {strides = array<i32>} : memref<16x32xf32, #tpu.memory_space<vmem>>, vector<16x8xf32>,
    %93 = vector.extract_strided_slice %13 {offsets = [0, 24], sizes = [16, 8], strides = [1, 1]} : vector<16x32xf32> to vector<16x8xf32>
    %94 = vector.extract_strided_slice %14 {offsets = [0, 24], sizes = [16, 8], strides = [1, 1]} : vector<16x32xf32> to vector<16x8xf32>
    %95 = vector.extract_strided_slice %3 {offsets = [0, 24], sizes = [16, 8], strides = [1, 1]} : vector<16x32xf32> to vector<16x8xf32>
    %cst_42 = arith.constant dense<0.000000e+00> : vector<16x16xf32>
    %96 = tpu.matmul %93, %94, %cst_42 {dimension_numbers = #tpu.dot_dimension_numbers<[1], [1], [0], [0], [0, 0, 1, 0], [], []>} : vector<16x8xf32>, vector<16x8xf32>, vector<16x16xf32> -> vector<16x16xf32>
    %c3 = arith.constant 3 : index
    %c0_43 = arith.constant 0 : index
    %c0_44 = arith.constant 0 : index
    %97 = vector.load %arg6[%c3, %c0_43, %c0_44] : memref<4x16x16xf32, #tpu.memory_space<vmem>>, vector<1x16x16xf32>
    %98 = vector.shape_cast %97 : vector<1x16x16xf32> to vector<16x16xf32>
    %99 = arith.mulf %96, %98 : vector<16x16xf32>
    %cst_45 = arith.constant dense<0.000000e+00> : vector<16xf32>
    %100 = vector.multi_reduction <add>, %99, %cst_45 [1] : vector<16x16xf32> to vector<16xf32>
    %101 = vector.shape_cast %100 : vector<16xf32> to vector<16x1xf32>
    %102 = math.absf %101 : vector<16x1xf32>
    %cst_46 = arith.constant 1.000000e+00 : f32
    %103 = vector.broadcast %cst_46 : f32 to vector<16x1xf32>
    %104 = arith.maximumf %102, %103 : vector<16x1xf32>
    %105 = vector.broadcast %104 : vector<16x1xf32> to vector<16x16xf32>
    %106 = arith.divf %99, %105 : vector<16x16xf32>
    %cst_47 = arith.constant dense<0.000000e+00> : vector<16x8xf32>
    %107 = tpu.matmul %106, %95, %cst_47 {dimension_numbers = #tpu.dot_dimension_numbers<[1], [0], [0], [1], [0, 0, 1, 1], [], []>} : vector<16x16xf32>, vector<16x8xf32>, vector<16x8xf32> -> vector<16x8xf32>
    %108 = arith.mulf %107, %107 : vector<16x8xf32>
    %cst_48 = arith.constant dense<0.000000e+00> : vector<16xf32>
    %109 = vector.multi_reduction <add>, %108, %cst_48 [1] : vector<16x8xf32> to vector<16xf32>
    %110 = vector.shape_cast %109 : vector<16xf32> to vector<16x1xf32>
    %cst_49 = arith.constant 8.000000e+00 : f32
    %111 = vector.broadcast %cst_49 : f32 to vector<16x1xf32>
    %112 = arith.divf %110, %111 : vector<16x1xf32>
    %cst_50 = arith.constant 9.99999974E-6 : f32
    %113 = vector.broadcast %cst_50 : f32 to vector<16x1xf32>
    %114 = arith.addf %112, %113 : vector<16x1xf32>
    %115 = math.rsqrt %114 : vector<16x1xf32>
    %116 = vector.broadcast %115 : vector<16x1xf32> to vector<16x8xf32>
    %117 = arith.mulf %107, %116 : vector<16x8xf32>
    %c0_51 = arith.constant 0 : index
    %c24 = arith.constant 24 : index
    %118 = vector.load %arg9[%c0_51, %c24] : memref<16x32xf32, #tpu.memory_space<vmem>>, vector<16x8xf32>
    tpu.vector_store %arg9[%c0_51, %c24], %117 {strides = array<i32>} : memref<16x32xf32, #tpu.memory_space<vmem>>, vector<16x8xf32>,
    %c0_52 = arith.constant 0 : index
    %c0_53 = arith.constant 0 : index
    %119 = vector.load %arg9[%c0_52, %c0_53] : memref<16x32xf32, #tpu.memory_space<vmem>>, vector<16x32xf32>
    %120 = arith.negf %4 : vector<16x32xf32>
    %121 = math.exp %120 : vector<16x32xf32>
    %cst_54 = arith.constant 1.000000e+00 : f32
    %122 = vector.broadcast %cst_54 : f32 to vector<16x32xf32>
    %123 = arith.addf %122, %121 : vector<16x32xf32>
    %124 = arith.divf %122, %123 : vector<16x32xf32>
    %125 = arith.mulf %4, %124 : vector<16x32xf32>
    %126 = arith.mulf %125, %119 : vector<16x32xf32>
    %c0_55 = arith.constant 0 : index
    %c0_56 = arith.constant 0 : index
    %127 = vector.load %arg7[%c0_55, %c0_56] : memref<32x32xf32, #tpu.memory_space<vmem>>, vector<32x32xf32>
    %cst_57 = arith.constant dense<0.000000e+00> : vector<16x32xf32>
    %128 = tpu.matmul %126, %127, %cst_57 {dimension_numbers = #tpu.dot_dimension_numbers<[1], [0], [0], [1], [0, 0, 1, 1], [], []>} : vector<16x32xf32>, vector<32x32xf32>, vector<16x32xf32> -> vector<16x32xf32>
    %c0_58 = arith.constant 0 : index
    %c0_59 = arith.constant 0 : index
    %129 = vector.load %arg8[%c0_58, %c0_59] : memref<16x32xf32, #tpu.memory_space<vmem>>, vector<16x32xf32>
    tpu.vector_store %arg8[%c0_58, %c0_59], %128 {strides = array<i32>} : memref<16x32xf32, #tpu.memory_space<vmem>>, vector<16x32xf32>,
    return
  }
  func.func @transform_0(%arg0: i32) -> (i32, i32) {
    %c0_i32 = arith.constant 0 : i32
    %c0_i32_0 = arith.constant 0 : i32
    %c0_i32_1 = arith.constant 0 : i32
    return %c0_i32, %c0_i32_0 : i32, i32
  }
  func.func @transform_1(%arg0: i32) -> (i32, i32) {
    %c0_i32 = arith.constant 0 : i32
    %c0_i32_0 = arith.constant 0 : i32
    %c0_i32_1 = arith.constant 0 : i32
    return %c0_i32, %c0_i32_0 : i32, i32
  }
  func.func @transform_2(%arg0: i32) -> (i32, i32) {
    %c0_i32 = arith.constant 0 : i32
    %c0_i32_0 = arith.constant 0 : i32
    %c0_i32_1 = arith.constant 0 : i32
    return %c0_i32, %c0_i32_0 : i32, i32
  }
  func.func @transform_3(%arg0: i32) -> (i32, i32) {
    %c0_i32 = arith.constant 0 : i32
    %c0_i32_0 = arith.constant 0 : i32
    %c0_i32_1 = arith.constant 0 : i32
    return %c0_i32, %c0_i32_0 : i32, i32
  }
  func.func @transform_4(%arg0: i32) -> (i32, i32) {
    %c0_i32 = arith.constant 0 : i32
    %c0_i32_0 = arith.constant 0 : i32
    %c0_i32_1 = arith.constant 0 : i32
    return %c0_i32, %c0_i32_0 : i32, i32
  }
  func.func @transform_5(%arg0: i32) -> (i32, i32, i32) {
    %c0_i32 = arith.constant 0 : i32
    %c0_i32_0 = arith.constant 0 : i32
    %c0_i32_1 = arith.constant 0 : i32
    %c0_i32_2 = arith.constant 0 : i32
    return %c0_i32, %c0_i32_0, %c0_i32_1 : i32, i32, i32
  }
  func.func @transform_6(%arg0: i32) -> (i32, i32) {
    %c0_i32 = arith.constant 0 : i32
    %c0_i32_0 = arith.constant 0 : i32
    %c0_i32_1 = arith.constant 0 : i32
    return %c0_i32, %c0_i32_0 : i32, i32
  }
  func.func @transform_7(%arg0: i32) -> (i32, i32) {
    %c0_i32 = arith.constant 0 : i32
    %c0_i32_0 = arith.constant 0 : i32
    %c0_i32_1 = arith.constant 0 : i32
    return %c0_i32, %c0_i32_0 : i32, i32
  }
}

</mosaic_0001>

<llo_original>
// kernel: multi_scale_retention.1
$region0: #{multi_scale_retention.1}
  #allocation0 [shape = 'u32[]', space=smem, size = 0x4, offset = 0x4, fixed_abs, tag = 'smem constant byte address 0x4 - core index']
  #allocation1 [shape = 'u32[144,128]{1,0:T(1,128)}', space=vmem, size = 0x12000, scoped, tag = 'internal scratch']
  #allocation2 [shape = 'f32[16,32]{1,0:T(8,128)}', space=vmem, size = 0x2000, scoped, tag = 'scratch operand']
  %s0 = inlined_call_operand.hbm [shape: f32[16,32], index: 0, kind: input, shape index: {}]
  %s1 = inlined_call_operand.hbm [shape: f32[32,128], index: 1, kind: input, shape index: {}]
  %s2 = inlined_call_operand.hbm [shape: f32[64,64], index: 2, kind: input, shape index: {}]
  %s3 = inlined_call_operand.hbm [shape: f32[16,64], index: 3, kind: input, shape index: {}]
  %s4 = inlined_call_operand.vmem [shape: f32[16,64], index: 4, kind: input, shape index: {}]
  %s5 = inlined_call_operand.hbm [shape: f32[4,16,16], index: 5, kind: input, shape index: {}]
  %s6 = inlined_call_operand.hbm [shape: f32[32,32], index: 6, kind: input, shape index: {}]
  %s7 = inlined_call_operand.hbm [shape: f32[16,32], index: 7, kind: output, shape index: {}]
  %s8 = sld [smem:[#allocation0]]
  $region62: #{multi_scale_retention.1} parent=0
    _
  %s10 = ssub.s32 1, %s8
  %s11 = scalar_select 0, %s10, %s8
  $region1: #{multi_scale_retention.1} parent=0
    #allocation3 [shape = 'u8[8192]{0}', space=vmem, size = 0x2000, scoped, tag = 'input window, operand 0, single buffered']
    #allocation4 [shape = 's32[1]{0}', space=sflag, size = 0x4, scoped, tag = 'scoped memory for multi_scale_retention.1']
    #allocation5 [shape = 's32[1]{0}', space=sflag, size = 0x4, scoped, tag = 'scoped memory for multi_scale_retention.1']
    #allocation6 [shape = 'u8[16384]{0}', space=vmem, size = 0x4000, scoped, tag = 'input window, operand 1, single buffered']
    #allocation7 [shape = 's32[1]{0}', space=sflag, size = 0x4, scoped, tag = 'scoped memory for multi_scale_retention.1']
    #allocation8 [shape = 'u8[32768]{0}', space=vmem, size = 0x8000, scoped, tag = 'input window, operand 2, single buffered']
    #allocation9 [shape = 'u8[8192]{0}', space=vmem, size = 0x2000, scoped, tag = 'input window, operand 3, single buffered']
    #allocation10 [shape = 's32[1]{0}', space=sflag, size = 0x4, scoped, tag = 'scoped memory for multi_scale_retention.1']
    #allocation11 [shape = 'u8[32768]{0}', space=vmem, size = 0x8000, scoped, tag = 'input window, operand 5, single buffered']
    #allocation12 [shape = 'u8[16384]{0}', space=vmem, size = 0x4000, scoped, tag = 'input window, operand 6, single buffered']
    #allocation13 [shape = 's32[1]{0}', space=sflag, size = 0x4, scoped, tag = 'scoped memory for multi_scale_retention.1']
    #allocation14 [shape = 'u8[8192]{0}', space=vmem, size = 0x2000, scoped, tag = 'output window, operand 0, single buffered']
    %12 = vsyncpa [#allocation4], 0
    %13 = vsyncpa [#allocation7], 0
    %14 = vsyncpa [#allocation10], 0
    %15 = vsyncpa [#allocation13], 0
    %16 = vsyncpa [#allocation5], 0
    // Predicated region
    $region2: #{multi_scale_retention.1} parent=1 // pred_check
      _
    $region3: #{multi_scale_retention.1} parent=1 // pred_check_branch
      %18 = sbr.rel (0) target = $region5
    $region4: #{multi_scale_retention.1} parent=1 // pred_region
      %s20 = ssub.s32 256, 256
      %21 = vsyncadd [#allocation4], %s20
      %s22 = sshll.u32 [#allocation3], 4
      %s23 = int_to_ptr.vmem [resolvable:$true] %s22
      %28 = dma.hbm_to_vmem [thread:$0]  %s0, 256, %s23, [#allocation4], 128, 128, 8
    $region5: #{multi_scale_retention.1} parent=1 // pred_fallthru
      _
    // Predicated region
    $region6: #{multi_scale_retention.1} parent=1 // pred_check
      _
    $region7: #{multi_scale_retention.1} parent=1 // pred_check_branch
      %30 = sbr.rel (0) target = $region9
    $region8: #{multi_scale_retention.1} parent=1 // pred_region
      %s32 = ssub.s32 512, 512
      %33 = vsyncadd [#allocation7], %s32
      %s34 = sshll.u32 [#allocation6], 4
      %s35 = int_to_ptr.vmem [resolvable:$true] %s34
      %40 = dma.hbm_to_vmem [thread:$0]  %s1, 512, %s35, [#allocation7], 128, 128, 8
    $region9: #{multi_scale_retention.1} parent=1 // pred_fallthru
      _
    // Predicated region
    $region10: #{multi_scale_retention.1} parent=1 // pred_check
      _
    $region11: #{multi_scale_retention.1} parent=1 // pred_check_branch
      %42 = sbr.rel (0) target = $region13
    $region12: #{multi_scale_retention.1} parent=1 // pred_region
      %s44 = ssub.s32 1024, 1024
      %45 = vsyncadd [#allocation7], %s44
      %s46 = sshll.u32 [#allocation8], 4
      %s47 = int_to_ptr.vmem [resolvable:$true] %s46
      %52 = dma.hbm_to_vmem [thread:$0]  %s2, 1024, %s47, [#allocation7], 128, 128, 8
    $region13: #{multi_scale_retention.1} parent=1 // pred_fallthru
      _
    // Predicated region
    $region14: #{multi_scale_retention.1} parent=1 // pred_check
      _
    $region15: #{multi_scale_retention.1} parent=1 // pred_check_branch
      %54 = sbr.rel (0) target = $region17
    $region16: #{multi_scale_retention.1} parent=1 // pred_region
      %s56 = ssub.s32 256, 256
      %57 = vsyncadd [#allocation10], %s56
      %s58 = sshll.u32 [#allocation9], 4
      %s59 = int_to_ptr.vmem [resolvable:$true] %s58
      %64 = dma.hbm_to_vmem [thread:$0]  %s3, 256, %s59, [#allocation10], 128, 128, 8
    $region17: #{multi_scale_retention.1} parent=1 // pred_fallthru
      _
    // Predicated region
    $region18: #{multi_scale_retention.1} parent=1 // pred_check
      _
    $region19: #{multi_scale_retention.1} parent=1 // pred_check_branch
      %66 = sbr.rel (0) target = $region21
    $region20: #{multi_scale_retention.1} parent=1 // pred_region
      _
    $region21: #{multi_scale_retention.1} parent=1 // pred_fallthru
      _
    // Predicated region
    $region22: #{multi_scale_retention.1} parent=1 // pred_check
      _
    $region23: #{multi_scale_retention.1} parent=1 // pred_check_branch
      %68 = sbr.rel (0) target = $region25
    $region24: #{multi_scale_retention.1} parent=1 // pred_region
      %s70 = ssub.s32 1024, 1024
      %71 = vsyncadd [#allocation10], %s70
      %s72 = sshll.u32 [#allocation11], 4
      %s73 = int_to_ptr.vmem [resolvable:$true] %s72
      %78 = dma.hbm_to_vmem [thread:$0]  %s5, 1024, %s73, [#allocation10], 128, 128, 8
    $region25: #{multi_scale_retention.1} parent=1 // pred_fallthru
      _
    // Predicated region
    $region26: #{multi_scale_retention.1} parent=1 // pred_check
      _
    $region27: #{multi_scale_retention.1} parent=1 // pred_check_branch
      %80 = sbr.rel (0) target = $region29
    $region28: #{multi_scale_retention.1} parent=1 // pred_region
      %s82 = ssub.s32 512, 512
      %83 = vsyncadd [#allocation13], %s82
      %s84 = sshll.u32 [#allocation12], 4
      %s85 = int_to_ptr.vmem [resolvable:$true] %s84
      %90 = dma.hbm_to_vmem [thread:$0]  %s6, 512, %s85, [#allocation13], 128, 128, 8
    $region29: #{multi_scale_retention.1} parent=1 // pred_fallthru
      _
    // Predicated region
    $region30: #{multi_scale_retention.1} parent=1 // pred_check
      _
    $region31: #{multi_scale_retention.1} parent=1 // pred_check_branch
      %92 = sbr.rel (0) target = $region33
    $region32: #{multi_scale_retention.1} parent=1 // pred_region
      %93 = dma.done [#allocation4], 256
    $region33: #{multi_scale_retention.1} parent=1 // pred_fallthru
      _
    // Predicated region
    $region34: #{multi_scale_retention.1} parent=1 // pred_check
      _
    $region35: #{multi_scale_retention.1} parent=1 // pred_check_branch
      %95 = sbr.rel (0) target = $region37
    $region36: #{multi_scale_retention.1} parent=1 // pred_region
      %96 = dma.done [#allocation7], 512
    $region37: #{multi_scale_retention.1} parent=1 // pred_fallthru
      _
    // Predicated region
    $region38: #{multi_scale_retention.1} parent=1 // pred_check
      _
    $region39: #{multi_scale_retention.1} parent=1 // pred_check_branch
      %98 = sbr.rel (0) target = $region41
    $region40: #{multi_scale_retention.1} parent=1 // pred_region
      %99 = dma.done [#allocation7], 1024
    $region41: #{multi_scale_retention.1} parent=1 // pred_fallthru
      _
    // Predicated region
    $region42: #{multi_scale_retention.1} parent=1 // pred_check
      _
    $region43: #{multi_scale_retention.1} parent=1 // pred_check_branch
      %101 = sbr.rel (0) target = $region45
    $region44: #{multi_scale_retention.1} parent=1 // pred_region
      %102 = dma.done [#allocation10], 256
    $region45: #{multi_scale_retention.1} parent=1 // pred_fallthru
      _
    // Predicated region
    $region46: #{multi_scale_retention.1} parent=1 // pred_check
      _
    $region47: #{multi_scale_retention.1} parent=1 // pred_check_branch
      %104 = sbr.rel (0) target = $region49
    $region48: #{multi_scale_retention.1} parent=1 // pred_region
      %105 = dma.done [#allocation10], 1024
    $region49: #{multi_scale_retention.1} parent=1 // pred_fallthru
      _
    // Predicated region
    $region50: #{multi_scale_retention.1} parent=1 // pred_check
      _
    $region51: #{multi_scale_retention.1} parent=1 // pred_check_branch
      %107 = sbr.rel (0) target = $region53
    $region52: #{multi_scale_retention.1} parent=1 // pred_region
      %108 = dma.done [#allocation13], 512
    $region53: #{multi_scale_retention.1} parent=1 // pred_fallthru
      _
    %v109 = vld [vmem:[#allocation3] sm:$0xff]
    %v110 = vld [vmem:[#allocation3 + $0x8] sm:$0xff]
    %v111 = vld [vmem:[#allocation6] sm:$0xff]
    %v112 = vld [vmem:[#allocation6 + $0x8] sm:$0xff]
    %v113 = vld [vmem:[#allocation6 + $0x10] sm:$0xff]
    %v114 = vld [vmem:[#allocation6 + $0x18] sm:$0xff]
    %vm115 = vcmask 261120
    %v117 = vsel %vm115, %v109, 0
    %v120 = vsel %vm115, %v110, 0
    %122 = vmatprep.subr.mxu0 0.0
    %123 = vmatpush1.msra.mxu0 %v111
    %124 = vmatprep.subr.mxu0 0.0
    %125 = vmatpush1.msra.mxu0 %v112
    %126 = vmatprep.subr.mxu0 0.0
    %127 = vmatpush1.msra.mxu0 %v113
    %128 = vmatprep.subr.mxu0 0.0
    %129 = vmatpush1.msra.mxu0 %v114
    %130 = vmatprep.subr.mxu0 0.0
    %131 = vmatpush1.msra.mxu0 0.0
    %132 = vmatprep.subr.mxu0 0.0
    %133 = vmatpush1.msra.mxu0 0.0
    %134 = vmatprep.subr.mxu0 0.0
    %135 = vmatpush1.msra.mxu0 0.0
    %136 = vmatprep.subr.mxu0 0.0
    %137 = vmatpush1.msra.mxu0 0.0
    %138 = vmatprep.subr.mxu0 0.0
    %139 = vmatpush1.msra.mxu0 0.0
    %140 = vmatprep.subr.mxu0 0.0
    %141 = vmatpush1.msra.mxu0 0.0
    %142 = vmatprep.subr.mxu0 0.0
    %143 = vmatpush1.msra.mxu0 0.0
    %144 = vmatprep.subr.mxu0 0.0
    %145 = vmatpush1.msra.mxu0 0.0
    %146 = vmatprep.subr.mxu0 0.0
    %147 = vmatpush1.msra.mxu0 0.0
    %148 = vmatprep.subr.mxu0 0.0
    %149 = vmatpush1.msra.mxu0 0.0
    %150 = vmatprep.subr.mxu0 0.0
    %151 = vmatpush1.msra.mxu0 0.0
    %152 = vmatprep.subr.mxu0 0.0
    %153 = vmatpush1.msra.mxu0 0.0
    %154 = vmatprep.subr.mxu0 0.0
    %155 = vmatpush1.msra.mxu0 0.0
    %156 = vmatprep.subr.mxu0 0.0
    %157 = vmatpush1.msra.mxu0 0.0
    %158 = vmatprep.subr.mxu0 0.0
    %159 = vmatpush1.msra.mxu0 0.0
    %160 = vmatprep.subr.mxu0 0.0
    %161 = vmatpush1.msra.mxu0 0.0
    %162 = vmatprep.subr.mxu0 0.0
    %163 = vmatpush1.msra.mxu0 0.0
    %164 = vmatprep.subr.mxu0 0.0
    %165 = vmatpush1.msra.mxu0 0.0
    %166 = vmatprep.subr.mxu0 0.0
    %167 = vmatpush1.msra.mxu0 0.0
    %168 = vmatprep.subr.mxu0 0.0
    %169 = vmatpush1.msra.mxu0 0.0
    %170 = vmatprep.subr.mxu0 0.0
    %171 = vmatpush1.msra.mxu0 0.0
    %172 = vmatprep.subr.mxu0 0.0
    %173 = vmatpush1.msra.mxu0 0.0
    %174 = vmatprep.subr.mxu0 0.0
    %175 = vmatpush1.msra.mxu0 0.0
    %176 = vmatprep.subr.mxu0 0.0
    %177 = vmatpush1.msra.mxu0 0.0
    %178 = vmatprep.subr.mxu0 0.0
    %179 = vmatpush1.msra.mxu0 0.0
    %180 = vmatprep.subr.mxu0 0.0
    %181 = vmatpush1.msra.mxu0 0.0
    %182 = vmatprep.subr.mxu0 0.0
    %183 = vmatpush1.msra.mxu0 0.0
    %184 = vmatprep.subr.mxu0 0.0
    %185 = vmatpush1.msra.mxu0 0.0
    %186 = vmatprep.mubr.f32.mxu0 0.0
    %187 = vmatmul.mubr.f32.gmra.mrb[0].mxu0 %v117
    %v188 = vpop.f32.mrb[0].mxu0
    %v189 = vadd.f32 0.0, %v188
    %v190 = vpop.f32.mrb[0].mxu0
    %191 = vmatprep.mubr.f32.mxu0 0.0
    %192 = vmatmul.mubr.f32.gmra.mrb[0].mxu0 %v120
    %v193 = vpop.f32.mrb[0].mxu0
    %v194 = vadd.f32 0.0, %v193
    %v195 = vpop.f32.mrb[0].mxu0
    %196 = vdwg.mxu0
    %v197 = vld [vmem:[%s4] sm:$0xff]
    %v198 = vld [vmem:[%s4 + $0x8] sm:$0xff]
    %v199 = vmul.f32 %v189, %v197
    %v200 = vmul.f32 %v194, %v198
    %v201 = vld [vmem:[#allocation8] sm:$0xff]
    %v202 = vld [vmem:[#allocation8 + $0x8] sm:$0xff]
    %v203 = vld [vmem:[#allocation8 + $0x10] sm:$0xff]
    %v204 = vld [vmem:[#allocation8 + $0x18] sm:$0xff]
    %v205 = vld [vmem:[#allocation8 + $0x20] sm:$0xff]
    %v206 = vld [vmem:[#allocation8 + $0x28] sm:$0xff]
    %v207 = vld [vmem:[#allocation8 + $0x30] sm:$0xff]
    %v208 = vld [vmem:[#allocation8 + $0x38] sm:$0xff]
    %vm209 = vcmask 523264
    %v211 = vsel %vm209, %v189, 0
    %v214 = vsel %vm209, %v194, 0
    %216 = vmatprep.subr.mxu0 0.0
    %217 = vmatpush1.msra.mxu0 %v201
    %218 = vmatprep.subr.mxu0 0.0
    %219 = vmatpush1.msra.mxu0 %v202
    %220 = vmatprep.subr.mxu0 0.0
    %221 = vmatpush1.msra.mxu0 %v203
    %222 = vmatprep.subr.mxu0 0.0
    %223 = vmatpush1.msra.mxu0 %v204
    %224 = vmatprep.subr.mxu0 0.0
    %225 = vmatpush1.msra.mxu0 %v205
    %226 = vmatprep.subr.mxu0 0.0
    %227 = vmatpush1.msra.mxu0 %v206
    %228 = vmatprep.subr.mxu0 0.0
    %229 = vmatpush1.msra.mxu0 %v207
    %230 = vmatprep.subr.mxu0 0.0
    %231 = vmatpush1.msra.mxu0 %v208
    %232 = vmatprep.subr.mxu0 0.0
    %233 = vmatpush1.msra.mxu0 0.0
    %234 = vmatprep.subr.mxu0 0.0
    %235 = vmatpush1.msra.mxu0 0.0
    %236 = vmatprep.subr.mxu0 0.0
    %237 = vmatpush1.msra.mxu0 0.0
    %238 = vmatprep.subr.mxu0 0.0
    %239 = vmatpush1.msra.mxu0 0.0
    %240 = vmatprep.subr.mxu0 0.0
    %241 = vmatpush1.msra.mxu0 0.0
    %242 = vmatprep.subr.mxu0 0.0
    %243 = vmatpush1.msra.mxu0 0.0
    %244 = vmatprep.subr.mxu0 0.0
    %245 = vmatpush1.msra.mxu0 0.0
    %246 = vmatprep.subr.mxu0 0.0
    %247 = vmatpush1.msra.mxu0 0.0
    %248 = vmatprep.subr.mxu0 0.0
    %249 = vmatpush1.msra.mxu0 0.0
    %250 = vmatprep.subr.mxu0 0.0
    %251 = vmatpush1.msra.mxu0 0.0
    %252 = vmatprep.subr.mxu0 0.0
    %253 = vmatpush1.msra.mxu0 0.0
    %254 = vmatprep.subr.mxu0 0.0
    %255 = vmatpush1.msra.mxu0 0.0
    %256 = vmatprep.subr.mxu0 0.0
    %257 = vmatpush1.msra.mxu0 0.0
    %258 = vmatprep.subr.mxu0 0.0
    %259 = vmatpush1.msra.mxu0 0.0
    %260 = vmatprep.subr.mxu0 0.0
    %261 = vmatpush1.msra.mxu0 0.0
    %262 = vmatprep.subr.mxu0 0.0
    %263 = vmatpush1.msra.mxu0 0.0
    %264 = vmatprep.subr.mxu0 0.0
    %265 = vmatpush1.msra.mxu0 0.0
    %266 = vmatprep.subr.mxu0 0.0
    %267 = vmatpush1.msra.mxu0 0.0
    %268 = vmatprep.subr.mxu0 0.0
    %269 = vmatpush1.msra.mxu0 0.0
    %270 = vmatprep.subr.mxu0 0.0
    %271 = vmatpush1.msra.mxu0 0.0
    %272 = vmatprep.subr.mxu0 0.0
    %273 = vmatpush1.msra.mxu0 0.0
    %274 = vmatprep.subr.mxu0 0.0
    %275 = vmatpush1.msra.mxu0 0.0
    %276 = vmatprep.subr.mxu0 0.0
    %277 = vmatpush1.msra.mxu0 0.0
    %278 = vmatprep.subr.mxu0 0.0
    %279 = vmatpush1.msra.mxu0 0.0
    %280 = vmatprep.mubr.f32.mxu0 0.0
    %281 = vmatmul.mubr.f32.gmra.mrb[0].mxu0 %v211
    %v282 = vpop.f32.mrb[0].mxu0
    %v283 = vadd.f32 0.0, %v282
    %v284 = vpop.f32.mrb[0].mxu0
    %285 = vmatprep.mubr.f32.mxu0 0.0
    %286 = vmatmul.mubr.f32.gmra.mrb[0].mxu0 %v214
    %v287 = vpop.f32.mrb[0].mxu0
    %v288 = vadd.f32 0.0, %v287
    %v289 = vpop.f32.mrb[0].mxu0
    %290 = vdwg.mxu0
    %v291 = vld [vmem:[#allocation9] sm:$0xff]
    %v292 = vld [vmem:[#allocation9 + $0x8] sm:$0xff]
    %v293 = vmul.f32 %v283, %v291
    %v294 = vmul.f32 %v288, %v292
    %v295 = vadd.f32 %v199, %v293
    %v296 = vadd.f32 %v200, %v294
    %299 = vrot.lane.b32.xlu0 %v295, 96
    %v300 = vpop.permute.xlu0 %299
    %301 = vrot.lane.b32.xlu0 %v296, 96
    %v302 = vpop.permute.xlu0 %301
    %vm303 = vcmask 64512
    %v304 = vsel %vm303, %v295, 0
    %v306 = vsel %vm303, %v296, 0
    %v308 = vsel %vm303, %v300, 0
    %v310 = vsel %vm303, %v302, 0
    %312 = vmatprep.subr.mxu0 0.0
    %313 = vmatpush1.xpose.msra.mxu0 %v308
    %314 = vmatprep.subr.mxu0 0.0
    %315 = vmatpush1.xpose.msra.mxu0 %v310
    %316 = vmatprep.subr.mxu0 0.0
    %317 = vmatpush1.xpose.msra.mxu0 0.0
    %318 = vmatprep.subr.mxu0 0.0
    %319 = vmatpush1.xpose.msra.mxu0 0.0
    %320 = vmatprep.subr.mxu0 0.0
    %321 = vmatpush1.xpose.msra.mxu0 0.0
    %322 = vmatprep.subr.mxu0 0.0
    %323 = vmatpush1.xpose.msra.mxu0 0.0
    %324 = vmatprep.subr.mxu0 0.0
    %325 = vmatpush1.xpose.msra.mxu0 0.0
    %326 = vmatprep.subr.mxu0 0.0
    %327 = vmatpush1.xpose.msra.mxu0 0.0
    %328 = vmatprep.subr.mxu0 0.0
    %329 = vmatpush1.xpose.msra.mxu0 0.0
    %330 = vmatprep.subr.mxu0 0.0
    %331 = vmatpush1.xpose.msra.mxu0 0.0
    %332 = vmatprep.subr.mxu0 0.0
    %333 = vmatpush1.xpose.msra.mxu0 0.0
    %334 = vmatprep.subr.mxu0 0.0
    %335 = vmatpush1.xpose.msra.mxu0 0.0
    %336 = vmatprep.subr.mxu0 0.0
    %337 = vmatpush1.xpose.msra.mxu0 0.0
    %338 = vmatprep.subr.mxu0 0.0
    %339 = vmatpush1.xpose.msra.mxu0 0.0
    %340 = vmatprep.subr.mxu0 0.0
    %341 = vmatpush1.xpose.msra.mxu0 0.0
    %342 = vmatprep.subr.mxu0 0.0
    %343 = vmatpush1.xpose.msra.mxu0 0.0
    %344 = vmatprep.subr.mxu0 0.0
    %345 = vmatpush1.xpose.msra.mxu0 0.0
    %346 = vmatprep.subr.mxu0 0.0
    %347 = vmatpush1.xpose.msra.mxu0 0.0
    %348 = vmatprep.subr.mxu0 0.0
    %349 = vmatpush1.xpose.msra.mxu0 0.0
    %350 = vmatprep.subr.mxu0 0.0
    %351 = vmatpush1.xpose.msra.mxu0 0.0
    %352 = vmatprep.subr.mxu0 0.0
    %353 = vmatpush1.xpose.msra.mxu0 0.0
    %354 = vmatprep.subr.mxu0 0.0
    %355 = vmatpush1.xpose.msra.mxu0 0.0
    %356 = vmatprep.subr.mxu0 0.0
    %357 = vmatpush1.xpose.msra.mxu0 0.0
    %358 = vmatprep.subr.mxu0 0.0
    %359 = vmatpush1.xpose.msra.mxu0 0.0
    %360 = vmatprep.subr.mxu0 0.0
    %361 = vmatpush1.xpose.msra.mxu0 0.0
    %362 = vmatprep.subr.mxu0 0.0
    %363 = vmatpush1.xpose.msra.mxu0 0.0
    %364 = vmatprep.subr.mxu0 0.0
    %365 = vmatpush1.xpose.msra.mxu0 0.0
    %366 = vmatprep.subr.mxu0 0.0
    %367 = vmatpush1.xpose.msra.mxu0 0.0
    %368 = vmatprep.subr.mxu0 0.0
    %369 = vmatpush1.xpose.msra.mxu0 0.0
    %370 = vmatprep.subr.mxu0 0.0
    %371 = vmatpush1.xpose.msra.mxu0 0.0
    %372 = vmatprep.subr.mxu0 0.0
    %373 = vmatpush1.xpose.msra.mxu0 0.0
    %374 = vmatprep.subr.mxu0 0.0
    %375 = vmatpush1.xpose.msra.mxu0 0.0
    %376 = vmatprep.mubr.f32.mxu0 0.0
    %377 = vmatmul.mubr.f32.gmra.mrb[0].mxu0 %v304
    %v378 = vpop.f32.mrb[0].mxu0
    %v379 = vadd.f32 0.0, %v378
    %v380 = vpop.f32.mrb[0].mxu0
    %381 = vmatprep.mubr.f32.mxu0 0.0
    %382 = vmatmul.mubr.f32.gmra.mrb[0].mxu0 %v306
    %v383 = vpop.f32.mrb[0].mxu0
    %v384 = vadd.f32 0.0, %v383
    %v385 = vpop.f32.mrb[0].mxu0
    %386 = vdwg.mxu0
    %v387 = vld [vmem:[#allocation11] sm:$0xff]
    %v388 = vld [vmem:[#allocation11 + $0x8] sm:$0xff]
    %v389 = vmul.f32 %v379, %v387
    %v390 = vmul.f32 %v384, %v388
    %vm391 = vcmask 130048
    %v392 = vsel %vm391, %v389, 0.0
    %393 = vadd.xlane.f32.xlu0 %v392
    %v394 = vpop.xlane.xlu0 %393
    %v395 = vsel %vm391, %v390, 0.0
    %396 = vadd.xlane.f32.xlu0 %v395
    %v397 = vpop.xlane.xlu0 %396
    %v398 = vand.u32 2147483647, %v394
    %v399 = vand.u32 2147483647, %v397
    %v400 = vmax.f32 %v398, 1.0
    %v401 = vmax.f32 %v399, 1.0
    %v402 = vrcp.pop %v400
    %v403 = vmul.f32 %v389, %v402
    %v404 = vrcp.pop %v401
    %v405 = vmul.f32 %v390, %v404
    %406 = vrot.lane.b32.xlu0 %v189, 64
    %v407 = vpop.permute.xlu0 %406
    %408 = vrot.lane.b32.xlu0 %v194, 64
    %v409 = vpop.permute.xlu0 %408
    %v413 = vsel %vm391, %v403, 0
    %v416 = vsel %vm391, %v405, 0
    %418 = vmatprep.subr.mxu0 0.0
    %419 = vmatpush1.msra.mxu0 %v407
    %420 = vmatprep.subr.mxu0 0.0
    %421 = vmatpush1.msra.mxu0 %v409
    %422 = vmatprep.subr.mxu0 0.0
    %423 = vmatpush1.msra.mxu0 0.0
    %424 = vmatprep.subr.mxu0 0.0
    %425 = vmatpush1.msra.mxu0 0.0
    %426 = vmatprep.subr.mxu0 0.0
    %427 = vmatpush1.msra.mxu0 0.0
    %428 = vmatprep.subr.mxu0 0.0
    %429 = vmatpush1.msra.mxu0 0.0
    %430 = vmatprep.subr.mxu0 0.0
    %431 = vmatpush1.msra.mxu0 0.0
    %432 = vmatprep.subr.mxu0 0.0
    %433 = vmatpush1.msra.mxu0 0.0
    %434 = vmatprep.subr.mxu0 0.0
    %435 = vmatpush1.msra.mxu0 0.0
    %436 = vmatprep.subr.mxu0 0.0
    %437 = vmatpush1.msra.mxu0 0.0
    %438 = vmatprep.subr.mxu0 0.0
    %439 = vmatpush1.msra.mxu0 0.0
    %440 = vmatprep.subr.mxu0 0.0
    %441 = vmatpush1.msra.mxu0 0.0
    %442 = vmatprep.subr.mxu0 0.0
    %443 = vmatpush1.msra.mxu0 0.0
    %444 = vmatprep.subr.mxu0 0.0
    %445 = vmatpush1.msra.mxu0 0.0
    %446 = vmatprep.subr.mxu0 0.0
    %447 = vmatpush1.msra.mxu0 0.0
    %448 = vmatprep.subr.mxu0 0.0
    %449 = vmatpush1.msra.mxu0 0.0
    %450 = vmatprep.subr.mxu0 0.0
    %451 = vmatpush1.msra.mxu0 0.0
    %452 = vmatprep.subr.mxu0 0.0
    %453 = vmatpush1.msra.mxu0 0.0
    %454 = vmatprep.subr.mxu0 0.0
    %455 = vmatpush1.msra.mxu0 0.0
    %456 = vmatprep.subr.mxu0 0.0
    %457 = vmatpush1.msra.mxu0 0.0
    %458 = vmatprep.subr.mxu0 0.0
    %459 = vmatpush1.msra.mxu0 0.0
    %460 = vmatprep.subr.mxu0 0.0
    %461 = vmatpush1.msra.mxu0 0.0
    %462 = vmatprep.subr.mxu0 0.0
    %463 = vmatpush1.msra.mxu0 0.0
    %464 = vmatprep.subr.mxu0 0.0
    %465 = vmatpush1.msra.mxu0 0.0
    %466 = vmatprep.subr.mxu0 0.0
    %467 = vmatpush1.msra.mxu0 0.0
    %468 = vmatprep.subr.mxu0 0.0
    %469 = vmatpush1.msra.mxu0 0.0
    %470 = vmatprep.subr.mxu0 0.0
    %471 = vmatpush1.msra.mxu0 0.0
    %472 = vmatprep.subr.mxu0 0.0
    %473 = vmatpush1.msra.mxu0 0.0
    %474 = vmatprep.subr.mxu0 0.0
    %475 = vmatpush1.msra.mxu0 0.0
    %476 = vmatprep.subr.mxu0 0.0
    %477 = vmatpush1.msra.mxu0 0.0
    %478 = vmatprep.subr.mxu0 0.0
    %479 = vmatpush1.msra.mxu0 0.0
    %480 = vmatprep.subr.mxu0 0.0
    %481 = vmatpush1.msra.mxu0 0.0
    %482 = vmatprep.mubr.f32.mxu0 0.0
    %483 = vmatmul.mubr.f32.gmra.mrb[0].mxu0 %v413
    %v484 = vpop.f32.mrb[0].mxu0
    %v485 = vadd.f32 0.0, %v484
    %v486 = vpop.f32.mrb[0].mxu0
    %487 = vmatprep.mubr.f32.mxu0 0.0
    %488 = vmatmul.mubr.f32.gmra.mrb[0].mxu0 %v416
    %v489 = vpop.f32.mrb[0].mxu0
    %v490 = vadd.f32 0.0, %v489
    %v491 = vpop.f32.mrb[0].mxu0
    %492 = vdwg.mxu0
    %v493 = vmul.f32 %v485, %v485
    %v494 = vmul.f32 %v490, %v490
    %v495 = vsel %vm303, %v493, 0.0
    %496 = vadd.xlane.f32.xlu0 %v495
    %v497 = vpop.xlane.xlu0 %496
    %v498 = vsel %vm303, %v494, 0.0
    %499 = vadd.xlane.f32.xlu0 %v498
    %v500 = vpop.xlane.xlu0 %499
    %v501 = vrcp.pop 8.0
    %v502 = vmul.f32 %v497, %v501
    %v503 = vmul.f32 %v500, %v501
    %v504 = vadd.f32 %v502, 1e-05
    %v505 = vadd.f32 %v503, 1e-05
    %v506 = vrsqrt.pop %v504
    %v507 = vrsqrt.pop %v505
    %v508 = vmul.f32 %v485, %v506
    %v509 = vmul.f32 %v490, %v507
    %510 = vst.msk [vmem:[#allocation2] sm:$0xff] %vm303, %v508
    %511 = vst.msk [vmem:[#allocation2 + $0x8] sm:$0xff] %vm303, %v509
    %512 = vrot.lane.b32.xlu0 %v295, 120
    %v513 = vpop.permute.xlu0 %512
    %514 = vrot.lane.b32.xlu0 %v296, 120
    %v515 = vpop.permute.xlu0 %514
    %516 = vrot.lane.b32.xlu0 %v295, 88
    %v517 = vpop.permute.xlu0 %516
    %518 = vrot.lane.b32.xlu0 %v296, 88
    %v519 = vpop.permute.xlu0 %518
    %v520 = vsel %vm303, %v513, 0
    %v522 = vsel %vm303, %v515, 0
    %v524 = vsel %vm303, %v517, 0
    %v526 = vsel %vm303, %v519, 0
    %528 = vmatprep.subr.mxu0 0.0
    %529 = vmatpush1.xpose.msra.mxu0 %v524
    %530 = vmatprep.subr.mxu0 0.0
    %531 = vmatpush1.xpose.msra.mxu0 %v526
    %532 = vmatprep.subr.mxu0 0.0
    %533 = vmatpush1.xpose.msra.mxu0 0.0
    %534 = vmatprep.subr.mxu0 0.0
    %535 = vmatpush1.xpose.msra.mxu0 0.0
    %536 = vmatprep.subr.mxu0 0.0
    %537 = vmatpush1.xpose.msra.mxu0 0.0
    %538 = vmatprep.subr.mxu0 0.0
    %539 = vmatpush1.xpose.msra.mxu0 0.0
    %540 = vmatprep.subr.mxu0 0.0
    %541 = vmatpush1.xpose.msra.mxu0 0.0
    %542 = vmatprep.subr.mxu0 0.0
    %543 = vmatpush1.xpose.msra.mxu0 0.0
    %544 = vmatprep.subr.mxu0 0.0
    %545 = vmatpush1.xpose.msra.mxu0 0.0
    %546 = vmatprep.subr.mxu0 0.0
    %547 = vmatpush1.xpose.msra.mxu0 0.0
    %548 = vmatprep.subr.mxu0 0.0
    %549 = vmatpush1.xpose.msra.mxu0 0.0
    %550 = vmatprep.subr.mxu0 0.0
    %551 = vmatpush1.xpose.msra.mxu0 0.0
    %552 = vmatprep.subr.mxu0 0.0
    %553 = vmatpush1.xpose.msra.mxu0 0.0
    %554 = vmatprep.subr.mxu0 0.0
    %555 = vmatpush1.xpose.msra.mxu0 0.0
    %556 = vmatprep.subr.mxu0 0.0
    %557 = vmatpush1.xpose.msra.mxu0 0.0
    %558 = vmatprep.subr.mxu0 0.0
    %559 = vmatpush1.xpose.msra.mxu0 0.0
    %560 = vmatprep.subr.mxu0 0.0
    %561 = vmatpush1.xpose.msra.mxu0 0.0
    %562 = vmatprep.subr.mxu0 0.0
    %563 = vmatpush1.xpose.msra.mxu0 0.0
    %564 = vmatprep.subr.mxu0 0.0
    %565 = vmatpush1.xpose.msra.mxu0 0.0
    %566 = vmatprep.subr.mxu0 0.0
    %567 = vmatpush1.xpose.msra.mxu0 0.0
    %568 = vmatprep.subr.mxu0 0.0
    %569 = vmatpush1.xpose.msra.mxu0 0.0
    %570 = vmatprep.subr.mxu0 0.0
    %571 = vmatpush1.xpose.msra.mxu0 0.0
    %572 = vmatprep.subr.mxu0 0.0
    %573 = vmatpush1.xpose.msra.mxu0 0.0
    %574 = vmatprep.subr.mxu0 0.0
    %575 = vmatpush1.xpose.msra.mxu0 0.0
    %576 = vmatprep.subr.mxu0 0.0
    %577 = vmatpush1.xpose.msra.mxu0 0.0
    %578 = vmatprep.subr.mxu0 0.0
    %579 = vmatpush1.xpose.msra.mxu0 0.0
    %580 = vmatprep.subr.mxu0 0.0
    %581 = vmatpush1.xpose.msra.mxu0 0.0
    %582 = vmatprep.subr.mxu0 0.0
    %583 = vmatpush1.xpose.msra.mxu0 0.0
    %584 = vmatprep.subr.mxu0 0.0
    %585 = vmatpush1.xpose.msra.mxu0 0.0
    %586 = vmatprep.subr.mxu0 0.0
    %587 = vmatpush1.xpose.msra.mxu0 0.0
    %588 = vmatprep.subr.mxu0 0.0
    %589 = vmatpush1.xpose.msra.mxu0 0.0
    %590 = vmatprep.subr.mxu0 0.0
    %591 = vmatpush1.xpose.msra.mxu0 0.0
    %592 = vmatprep.mubr.f32.mxu0 0.0
    %593 = vmatmul.mubr.f32.gmra.mrb[0].mxu0 %v520
    %v594 = vpop.f32.mrb[0].mxu0
    %v595 = vadd.f32 0.0, %v594
    %v596 = vpop.f32.mrb[0].mxu0
    %597 = vmatprep.mubr.f32.mxu0 0.0
    %598 = vmatmul.mubr.f32.gmra.mrb[0].mxu0 %v522
    %v599 = vpop.f32.mrb[0].mxu0
    %v600 = vadd.f32 0.0, %v599
    %v601 = vpop.f32.mrb[0].mxu0
    %602 = vdwg.mxu0
    %s603 = scalar_lea.vmem [#allocation11], 16
    %v604 = vld [vmem:[%s603] sm:$0xff]
    %v605 = vld [vmem:[%s603 + $0x8] sm:$0xff]
    %v606 = vmul.f32 %v595, %v604
    %v607 = vmul.f32 %v600, %v605
    %v608 = vsel %vm391, %v606, 0.0
    %609 = vadd.xlane.f32.xlu0 %v608
    %v610 = vpop.xlane.xlu0 %609
    %v611 = vsel %vm391, %v607, 0.0
    %612 = vadd.xlane.f32.xlu0 %v611
    %v613 = vpop.xlane.xlu0 %612
    %v614 = vand.u32 2147483647, %v610
    %v615 = vand.u32 2147483647, %v613
    %v616 = vmax.f32 %v614, 1.0
    %v617 = vmax.f32 %v615, 1.0
    %v618 = vrcp.pop %v616
    %v619 = vmul.f32 %v606, %v618
    %v620 = vrcp.pop %v617
    %v621 = vmul.f32 %v607, %v620
    %622 = vrot.lane.b32.xlu0 %v189, 56
    %v623 = vpop.permute.xlu0 %622
    %624 = vrot.lane.b32.xlu0 %v194, 56
    %v625 = vpop.permute.xlu0 %624
    %v629 = vsel %vm391, %v619, 0
    %v632 = vsel %vm391, %v621, 0
    %634 = vmatprep.subr.mxu0 0.0
    %635 = vmatpush1.msra.mxu0 %v623
    %636 = vmatprep.subr.mxu0 0.0
    %637 = vmatpush1.msra.mxu0 %v625
    %638 = vmatprep.subr.mxu0 0.0
    %639 = vmatpush1.msra.mxu0 0.0
    %640 = vmatprep.subr.mxu0 0.0
    %641 = vmatpush1.msra.mxu0 0.0
    %642 = vmatprep.subr.mxu0 0.0
    %643 = vmatpush1.msra.mxu0 0.0
    %644 = vmatprep.subr.mxu0 0.0
    %645 = vmatpush1.msra.mxu0 0.0
    %646 = vmatprep.subr.mxu0 0.0
    %647 = vmatpush1.msra.mxu0 0.0
    %648 = vmatprep.subr.mxu0 0.0
    %649 = vmatpush1.msra.mxu0 0.0
    %650 = vmatprep.subr.mxu0 0.0
    %651 = vmatpush1.msra.mxu0 0.0
    %652 = vmatprep.subr.mxu0 0.0
    %653 = vmatpush1.msra.mxu0 0.0
    %654 = vmatprep.subr.mxu0 0.0
    %655 = vmatpush1.msra.mxu0 0.0
    %656 = vmatprep.subr.mxu0 0.0
    %657 = vmatpush1.msra.mxu0 0.0
    %658 = vmatprep.subr.mxu0 0.0
    %659 = vmatpush1.msra.mxu0 0.0
    %660 = vmatprep.subr.mxu0 0.0
    %661 = vmatpush1.msra.mxu0 0.0
    %662 = vmatprep.subr.mxu0 0.0
    %663 = vmatpush1.msra.mxu0 0.0
    %664 = vmatprep.subr.mxu0 0.0
    %665 = vmatpush1.msra.mxu0 0.0
    %666 = vmatprep.subr.mxu0 0.0
    %667 = vmatpush1.msra.mxu0 0.0
    %668 = vmatprep.subr.mxu0 0.0
    %669 = vmatpush1.msra.mxu0 0.0
    %670 = vmatprep.subr.mxu0 0.0
    %671 = vmatpush1.msra.mxu0 0.0
    %672 = vmatprep.subr.mxu0 0.0
    %673 = vmatpush1.msra.mxu0 0.0
    %674 = vmatprep.subr.mxu0 0.0
    %675 = vmatpush1.msra.mxu0 0.0
    %676 = vmatprep.subr.mxu0 0.0
    %677 = vmatpush1.msra.mxu0 0.0
    %678 = vmatprep.subr.mxu0 0.0
    %679 = vmatpush1.msra.mxu0 0.0
    %680 = vmatprep.subr.mxu0 0.0
    %681 = vmatpush1.msra.mxu0 0.0
    %682 = vmatprep.subr.mxu0 0.0
    %683 = vmatpush1.msra.mxu0 0.0
    %684 = vmatprep.subr.mxu0 0.0
    %685 = vmatpush1.msra.mxu0 0.0
    %686 = vmatprep.subr.mxu0 0.0
    %687 = vmatpush1.msra.mxu0 0.0
    %688 = vmatprep.subr.mxu0 0.0
    %689 = vmatpush1.msra.mxu0 0.0
    %690 = vmatprep.subr.mxu0 0.0
    %691 = vmatpush1.msra.mxu0 0.0
    %692 = vmatprep.subr.mxu0 0.0
    %693 = vmatpush1.msra.mxu0 0.0
    %694 = vmatprep.subr.mxu0 0.0
    %695 = vmatpush1.msra.mxu0 0.0
    %696 = vmatprep.subr.mxu0 0.0
    %697 = vmatpush1.msra.mxu0 0.0
    %698 = vmatprep.mubr.f32.mxu0 0.0
    %699 = vmatmul.mubr.f32.gmra.mrb[0].mxu0 %v629
    %v700 = vpop.f32.mrb[0].mxu0
    %v701 = vadd.f32 0.0, %v700
    %v702 = vpop.f32.mrb[0].mxu0
    %703 = vmatprep.mubr.f32.mxu0 0.0
    %704 = vmatmul.mubr.f32.gmra.mrb[0].mxu0 %v632
    %v705 = vpop.f32.mrb[0].mxu0
    %v706 = vadd.f32 0.0, %v705
    %v707 = vpop.f32.mrb[0].mxu0
    %708 = vdwg.mxu0
    %v709 = vmul.f32 %v701, %v701
    %v710 = vmul.f32 %v706, %v706
    %v711 = vsel %vm303, %v709, 0.0
    %712 = vadd.xlane.f32.xlu0 %v711
    %v713 = vpop.xlane.xlu0 %712
    %v714 = vsel %vm303, %v710, 0.0
    %715 = vadd.xlane.f32.xlu0 %v714
    %v716 = vpop.xlane.xlu0 %715
    %v717 = vmul.f32 %v713, %v501
    %v718 = vmul.f32 %v716, %v501
    %v719 = vadd.f32 %v717, 1e-05
    %v720 = vadd.f32 %v718, 1e-05
    %v721 = vrsqrt.pop %v719
    %v722 = vrsqrt.pop %v720
    %v723 = vmul.f32 %v701, %v721
    %v724 = vmul.f32 %v706, %v722
    %727 = vrot.lane.b32.xlu0 %v723, 8
    %v728 = vpop.permute.xlu0 %727
    %729 = vrot.lane.b32.xlu0 %v724, 8
    %v730 = vpop.permute.xlu0 %729
    %vm733 = vcmask 130112
    %734 = vst.msk [vmem:[#allocation2] sm:$0xff] %vm733, %v728
    %735 = vst.msk [vmem:[#allocation2 + $0x8] sm:$0xff] %vm733, %v730
    %736 = vrot.lane.b32.xlu0 %v295, 112
    %v737 = vpop.permute.xlu0 %736
    %738 = vrot.lane.b32.xlu0 %v296, 112
    %v739 = vpop.permute.xlu0 %738
    %740 = vrot.lane.b32.xlu0 %v295, 80
    %v741 = vpop.permute.xlu0 %740
    %742 = vrot.lane.b32.xlu0 %v296, 80
    %v743 = vpop.permute.xlu0 %742
    %v744 = vsel %vm303, %v737, 0
    %v746 = vsel %vm303, %v739, 0
    %v748 = vsel %vm303, %v741, 0
    %v750 = vsel %vm303, %v743, 0
    %752 = vmatprep.subr.mxu0 0.0
    %753 = vmatpush1.xpose.msra.mxu0 %v748
    %754 = vmatprep.subr.mxu0 0.0
    %755 = vmatpush1.xpose.msra.mxu0 %v750
    %756 = vmatprep.subr.mxu0 0.0
    %757 = vmatpush1.xpose.msra.mxu0 0.0
    %758 = vmatprep.subr.mxu0 0.0
    %759 = vmatpush1.xpose.msra.mxu0 0.0
    %760 = vmatprep.subr.mxu0 0.0
    %761 = vmatpush1.xpose.msra.mxu0 0.0
    %762 = vmatprep.subr.mxu0 0.0
    %763 = vmatpush1.xpose.msra.mxu0 0.0
    %764 = vmatprep.subr.mxu0 0.0
    %765 = vmatpush1.xpose.msra.mxu0 0.0
    %766 = vmatprep.subr.mxu0 0.0
    %767 = vmatpush1.xpose.msra.mxu0 0.0
    %768 = vmatprep.subr.mxu0 0.0
    %769 = vmatpush1.xpose.msra.mxu0 0.0
    %770 = vmatprep.subr.mxu0 0.0
    %771 = vmatpush1.xpose.msra.mxu0 0.0
    %772 = vmatprep.subr.mxu0 0.0
    %773 = vmatpush1.xpose.msra.mxu0 0.0
    %774 = vmatprep.subr.mxu0 0.0
    %775 = vmatpush1.xpose.msra.mxu0 0.0
    %776 = vmatprep.subr.mxu0 0.0
    %777 = vmatpush1.xpose.msra.mxu0 0.0
    %778 = vmatprep.subr.mxu0 0.0
    %779 = vmatpush1.xpose.msra.mxu0 0.0
    %780 = vmatprep.subr.mxu0 0.0
    %781 = vmatpush1.xpose.msra.mxu0 0.0
    %782 = vmatprep.subr.mxu0 0.0
    %783 = vmatpush1.xpose.msra.mxu0 0.0
    %784 = vmatprep.subr.mxu0 0.0
    %785 = vmatpush1.xpose.msra.mxu0 0.0
    %786 = vmatprep.subr.mxu0 0.0
    %787 = vmatpush1.xpose.msra.mxu0 0.0
    %788 = vmatprep.subr.mxu0 0.0
    %789 = vmatpush1.xpose.msra.mxu0 0.0
    %790 = vmatprep.subr.mxu0 0.0
    %791 = vmatpush1.xpose.msra.mxu0 0.0
    %792 = vmatprep.subr.mxu0 0.0
    %793 = vmatpush1.xpose.msra.mxu0 0.0
    %794 = vmatprep.subr.mxu0 0.0
    %795 = vmatpush1.xpose.msra.mxu0 0.0
    %796 = vmatprep.subr.mxu0 0.0
    %797 = vmatpush1.xpose.msra.mxu0 0.0
    %798 = vmatprep.subr.mxu0 0.0
    %799 = vmatpush1.xpose.msra.mxu0 0.0
    %800 = vmatprep.subr.mxu0 0.0
    %801 = vmatpush1.xpose.msra.mxu0 0.0
    %802 = vmatprep.subr.mxu0 0.0
    %803 = vmatpush1.xpose.msra.mxu0 0.0
    %804 = vmatprep.subr.mxu0 0.0
    %805 = vmatpush1.xpose.msra.mxu0 0.0
    %806 = vmatprep.subr.mxu0 0.0
    %807 = vmatpush1.xpose.msra.mxu0 0.0
    %808 = vmatprep.subr.mxu0 0.0
    %809 = vmatpush1.xpose.msra.mxu0 0.0
    %810 = vmatprep.subr.mxu0 0.0
    %811 = vmatpush1.xpose.msra.mxu0 0.0
    %812 = vmatprep.subr.mxu0 0.0
    %813 = vmatpush1.xpose.msra.mxu0 0.0
    %814 = vmatprep.subr.mxu0 0.0
    %815 = vmatpush1.xpose.msra.mxu0 0.0
    %816 = vmatprep.mubr.f32.mxu0 0.0
    %817 = vmatmul.mubr.f32.gmra.mrb[0].mxu0 %v744
    %v818 = vpop.f32.mrb[0].mxu0
    %v819 = vadd.f32 0.0, %v818
    %v820 = vpop.f32.mrb[0].mxu0
    %821 = vmatprep.mubr.f32.mxu0 0.0
    %822 = vmatmul.mubr.f32.gmra.mrb[0].mxu0 %v746
    %v823 = vpop.f32.mrb[0].mxu0
    %v824 = vadd.f32 0.0, %v823
    %v825 = vpop.f32.mrb[0].mxu0
    %826 = vdwg.mxu0
    %s827 = scalar_lea.vmem [#allocation11], 32
    %v828 = vld [vmem:[%s827] sm:$0xff]
    %v829 = vld [vmem:[%s827 + $0x8] sm:$0xff]
    %v830 = vmul.f32 %v819, %v828
    %v831 = vmul.f32 %v824, %v829
    %v832 = vsel %vm391, %v830, 0.0
    %833 = vadd.xlane.f32.xlu0 %v832
    %v834 = vpop.xlane.xlu0 %833
    %v835 = vsel %vm391, %v831, 0.0
    %836 = vadd.xlane.f32.xlu0 %v835
    %v837 = vpop.xlane.xlu0 %836
    %v838 = vand.u32 2147483647, %v834
    %v839 = vand.u32 2147483647, %v837
    %v840 = vmax.f32 %v838, 1.0
    %v841 = vmax.f32 %v839, 1.0
    %v842 = vrcp.pop %v840
    %v843 = vmul.f32 %v830, %v842
    %v844 = vrcp.pop %v841
    %v845 = vmul.f32 %v831, %v844
    %846 = vrot.lane.b32.xlu0 %v189, 48
    %v847 = vpop.permute.xlu0 %846
    %848 = vrot.lane.b32.xlu0 %v194, 48
    %v849 = vpop.permute.xlu0 %848
    %v853 = vsel %vm391, %v843, 0
    %v856 = vsel %vm391, %v845, 0
    %858 = vmatprep.subr.mxu0 0.0
    %859 = vmatpush1.msra.mxu0 %v847
    %860 = vmatprep.subr.mxu0 0.0
    %861 = vmatpush1.msra.mxu0 %v849
    %862 = vmatprep.subr.mxu0 0.0
    %863 = vmatpush1.msra.mxu0 0.0
    %864 = vmatprep.subr.mxu0 0.0
    %865 = vmatpush1.msra.mxu0 0.0
    %866 = vmatprep.subr.mxu0 0.0
    %867 = vmatpush1.msra.mxu0 0.0
    %868 = vmatprep.subr.mxu0 0.0
    %869 = vmatpush1.msra.mxu0 0.0
    %870 = vmatprep.subr.mxu0 0.0
    %871 = vmatpush1.msra.mxu0 0.0
    %872 = vmatprep.subr.mxu0 0.0
    %873 = vmatpush1.msra.mxu0 0.0
    %874 = vmatprep.subr.mxu0 0.0
    %875 = vmatpush1.msra.mxu0 0.0
    %876 = vmatprep.subr.mxu0 0.0
    %877 = vmatpush1.msra.mxu0 0.0
    %878 = vmatprep.subr.mxu0 0.0
    %879 = vmatpush1.msra.mxu0 0.0
    %880 = vmatprep.subr.mxu0 0.0
    %881 = vmatpush1.msra.mxu0 0.0
    %882 = vmatprep.subr.mxu0 0.0
    %883 = vmatpush1.msra.mxu0 0.0
    %884 = vmatprep.subr.mxu0 0.0
    %885 = vmatpush1.msra.mxu0 0.0
    %886 = vmatprep.subr.mxu0 0.0
    %887 = vmatpush1.msra.mxu0 0.0
    %888 = vmatprep.subr.mxu0 0.0
    %889 = vmatpush1.msra.mxu0 0.0
    %890 = vmatprep.subr.mxu0 0.0
    %891 = vmatpush1.msra.mxu0 0.0
    %892 = vmatprep.subr.mxu0 0.0
    %893 = vmatpush1.msra.mxu0 0.0
    %894 = vmatprep.subr.mxu0 0.0
    %895 = vmatpush1.msra.mxu0 0.0
    %896 = vmatprep.subr.mxu0 0.0
    %897 = vmatpush1.msra.mxu0 0.0
    %898 = vmatprep.subr.mxu0 0.0
    %899 = vmatpush1.msra.mxu0 0.0
    %900 = vmatprep.subr.mxu0 0.0
    %901 = vmatpush1.msra.mxu0 0.0
    %902 = vmatprep.subr.mxu0 0.0
    %903 = vmatpush1.msra.mxu0 0.0
    %904 = vmatprep.subr.mxu0 0.0
    %905 = vmatpush1.msra.mxu0 0.0
    %906 = vmatprep.subr.mxu0 0.0
    %907 = vmatpush1.msra.mxu0 0.0
    %908 = vmatprep.subr.mxu0 0.0
    %909 = vmatpush1.msra.mxu0 0.0
    %910 = vmatprep.subr.mxu0 0.0
    %911 = vmatpush1.msra.mxu0 0.0
    %912 = vmatprep.subr.mxu0 0.0
    %913 = vmatpush1.msra.mxu0 0.0
    %914 = vmatprep.subr.mxu0 0.0
    %915 = vmatpush1.msra.mxu0 0.0
    %916 = vmatprep.subr.mxu0 0.0
    %917 = vmatpush1.msra.mxu0 0.0
    %918 = vmatprep.subr.mxu0 0.0
    %919 = vmatpush1.msra.mxu0 0.0
    %920 = vmatprep.subr.mxu0 0.0
    %921 = vmatpush1.msra.mxu0 0.0
    %922 = vmatprep.mubr.f32.mxu0 0.0
    %923 = vmatmul.mubr.f32.gmra.mrb[0].mxu0 %v853
    %v924 = vpop.f32.mrb[0].mxu0
    %v925 = vadd.f32 0.0, %v924
    %v926 = vpop.f32.mrb[0].mxu0
    %927 = vmatprep.mubr.f32.mxu0 0.0
    %928 = vmatmul.mubr.f32.gmra.mrb[0].mxu0 %v856
    %v929 = vpop.f32.mrb[0].mxu0
    %v930 = vadd.f32 0.0, %v929
    %v931 = vpop.f32.mrb[0].mxu0
    %932 = vdwg.mxu0
    %v933 = vmul.f32 %v925, %v925
    %v934 = vmul.f32 %v930, %v930
    %v935 = vsel %vm303, %v933, 0.0
    %936 = vadd.xlane.f32.xlu0 %v935
    %v937 = vpop.xlane.xlu0 %936
    %v938 = vsel %vm303, %v934, 0.0
    %939 = vadd.xlane.f32.xlu0 %v938
    %v940 = vpop.xlane.xlu0 %939
    %v941 = vmul.f32 %v937, %v501
    %v942 = vmul.f32 %v940, %v501
    %v943 = vadd.f32 %v941, 1e-05
    %v944 = vadd.f32 %v942, 1e-05
    %v945 = vrsqrt.pop %v943
    %v946 = vrsqrt.pop %v944
    %v947 = vmul.f32 %v925, %v945
    %v948 = vmul.f32 %v930, %v946
    %951 = vrot.lane.b32.xlu0 %v947, 16
    %v952 = vpop.permute.xlu0 %951
    %953 = vrot.lane.b32.xlu0 %v948, 16
    %v954 = vpop.permute.xlu0 %953
    %vm957 = vcmask 195712
    %958 = vst.msk [vmem:[#allocation2] sm:$0xff] %vm957, %v952
    %959 = vst.msk [vmem:[#allocation2 + $0x8] sm:$0xff] %vm957, %v954
    %960 = vrot.lane.b32.xlu0 %v295, 104
    %v961 = vpop.permute.xlu0 %960
    %962 = vrot.lane.b32.xlu0 %v296, 104
    %v963 = vpop.permute.xlu0 %962
    %964 = vrot.lane.b32.xlu0 %v295, 72
    %v965 = vpop.permute.xlu0 %964
    %966 = vrot.lane.b32.xlu0 %v296, 72
    %v967 = vpop.permute.xlu0 %966
    %v968 = vsel %vm303, %v961, 0
    %v970 = vsel %vm303, %v963, 0
    %v972 = vsel %vm303, %v965, 0
    %v974 = vsel %vm303, %v967, 0
    %976 = vmatprep.subr.mxu0 0.0
    %977 = vmatpush1.xpose.msra.mxu0 %v972
    %978 = vmatprep.subr.mxu0 0.0
    %979 = vmatpush1.xpose.msra.mxu0 %v974
    %980 = vmatprep.subr.mxu0 0.0
    %981 = vmatpush1.xpose.msra.mxu0 0.0
    %982 = vmatprep.subr.mxu0 0.0
    %983 = vmatpush1.xpose.msra.mxu0 0.0
    %984 = vmatprep.subr.mxu0 0.0
    %985 = vmatpush1.xpose.msra.mxu0 0.0
    %986 = vmatprep.subr.mxu0 0.0
    %987 = vmatpush1.xpose.msra.mxu0 0.0
    %988 = vmatprep.subr.mxu0 0.0
    %989 = vmatpush1.xpose.msra.mxu0 0.0
    %990 = vmatprep.subr.mxu0 0.0
    %991 = vmatpush1.xpose.msra.mxu0 0.0
    %992 = vmatprep.subr.mxu0 0.0
    %993 = vmatpush1.xpose.msra.mxu0 0.0
    %994 = vmatprep.subr.mxu0 0.0
    %995 = vmatpush1.xpose.msra.mxu0 0.0
    %996 = vmatprep.subr.mxu0 0.0
    %997 = vmatpush1.xpose.msra.mxu0 0.0
    %998 = vmatprep.subr.mxu0 0.0
    %999 = vmatpush1.xpose.msra.mxu0 0.0
    %1000 = vmatprep.subr.mxu0 0.0
    %1001 = vmatpush1.xpose.msra.mxu0 0.0
    %1002 = vmatprep.subr.mxu0 0.0
    %1003 = vmatpush1.xpose.msra.mxu0 0.0
    %1004 = vmatprep.subr.mxu0 0.0
    %1005 = vmatpush1.xpose.msra.mxu0 0.0
    %1006 = vmatprep.subr.mxu0 0.0
    %1007 = vmatpush1.xpose.msra.mxu0 0.0
    %1008 = vmatprep.subr.mxu0 0.0
    %1009 = vmatpush1.xpose.msra.mxu0 0.0
    %1010 = vmatprep.subr.mxu0 0.0
    %1011 = vmatpush1.xpose.msra.mxu0 0.0
    %1012 = vmatprep.subr.mxu0 0.0
    %1013 = vmatpush1.xpose.msra.mxu0 0.0
    %1014 = vmatprep.subr.mxu0 0.0
    %1015 = vmatpush1.xpose.msra.mxu0 0.0
    %1016 = vmatprep.subr.mxu0 0.0
    %1017 = vmatpush1.xpose.msra.mxu0 0.0
    %1018 = vmatprep.subr.mxu0 0.0
    %1019 = vmatpush1.xpose.msra.mxu0 0.0
    %1020 = vmatprep.subr.mxu0 0.0
    %1021 = vmatpush1.xpose.msra.mxu0 0.0
    %1022 = vmatprep.subr.mxu0 0.0
    %1023 = vmatpush1.xpose.msra.mxu0 0.0
    %1024 = vmatprep.subr.mxu0 0.0
    %1025 = vmatpush1.xpose.msra.mxu0 0.0
    %1026 = vmatprep.subr.mxu0 0.0
    %1027 = vmatpush1.xpose.msra.mxu0 0.0
    %1028 = vmatprep.subr.mxu0 0.0
    %1029 = vmatpush1.xpose.msra.mxu0 0.0
    %1030 = vmatprep.subr.mxu0 0.0
    %1031 = vmatpush1.xpose.msra.mxu0 0.0
    %1032 = vmatprep.subr.mxu0 0.0
    %1033 = vmatpush1.xpose.msra.mxu0 0.0
    %1034 = vmatprep.subr.mxu0 0.0
    %1035 = vmatpush1.xpose.msra.mxu0 0.0
    %1036 = vmatprep.subr.mxu0 0.0
    %1037 = vmatpush1.xpose.msra.mxu0 0.0
    %1038 = vmatprep.subr.mxu0 0.0
    %1039 = vmatpush1.xpose.msra.mxu0 0.0
    %1040 = vmatprep.mubr.f32.mxu0 0.0
    %1041 = vmatmul.mubr.f32.gmra.mrb[0].mxu0 %v968
    %v1042 = vpop.f32.mrb[0].mxu0
    %v1043 = vadd.f32 0.0, %v1042
    %v1044 = vpop.f32.mrb[0].mxu0
    %1045 = vmatprep.mubr.f32.mxu0 0.0
    %1046 = vmatmul.mubr.f32.gmra.mrb[0].mxu0 %v970
    %v1047 = vpop.f32.mrb[0].mxu0
    %v1048 = vadd.f32 0.0, %v1047
    %v1049 = vpop.f32.mrb[0].mxu0
    %1050 = vdwg.mxu0
    %s1051 = scalar_lea.vmem [#allocation11], 48
    %v1052 = vld [vmem:[%s1051] sm:$0xff]
    %v1053 = vld [vmem:[%s1051 + $0x8] sm:$0xff]
    %v1054 = vmul.f32 %v1043, %v1052
    %v1055 = vmul.f32 %v1048, %v1053
    %v1056 = vsel %vm391, %v1054, 0.0
    %1057 = vadd.xlane.f32.xlu0 %v1056
    %v1058 = vpop.xlane.xlu0 %1057
    %v1059 = vsel %vm391, %v1055, 0.0
    %1060 = vadd.xlane.f32.xlu0 %v1059
    %v1061 = vpop.xlane.xlu0 %1060
    %v1062 = vand.u32 2147483647, %v1058
    %v1063 = vand.u32 2147483647, %v1061
    %v1064 = vmax.f32 %v1062, 1.0
    %v1065 = vmax.f32 %v1063, 1.0
    %v1066 = vrcp.pop %v1064
    %v1067 = vmul.f32 %v1054, %v1066
    %v1068 = vrcp.pop %v1065
    %v1069 = vmul.f32 %v1055, %v1068
    %1070 = vrot.lane.b32.xlu0 %v189, 40
    %v1071 = vpop.permute.xlu0 %1070
    %1072 = vrot.lane.b32.xlu0 %v194, 40
    %v1073 = vpop.permute.xlu0 %1072
    %v1077 = vsel %vm391, %v1067, 0
    %v1080 = vsel %vm391, %v1069, 0
    %1082 = vmatprep.subr.mxu0 0.0
    %1083 = vmatpush1.msra.mxu0 %v1071
    %1084 = vmatprep.subr.mxu0 0.0
    %1085 = vmatpush1.msra.mxu0 %v1073
    %1086 = vmatprep.subr.mxu0 0.0
    %1087 = vmatpush1.msra.mxu0 0.0
    %1088 = vmatprep.subr.mxu0 0.0
    %1089 = vmatpush1.msra.mxu0 0.0
    %1090 = vmatprep.subr.mxu0 0.0
    %1091 = vmatpush1.msra.mxu0 0.0
    %1092 = vmatprep.subr.mxu0 0.0
    %1093 = vmatpush1.msra.mxu0 0.0
    %1094 = vmatprep.subr.mxu0 0.0
    %1095 = vmatpush1.msra.mxu0 0.0
    %1096 = vmatprep.subr.mxu0 0.0
    %1097 = vmatpush1.msra.mxu0 0.0
    %1098 = vmatprep.subr.mxu0 0.0
    %1099 = vmatpush1.msra.mxu0 0.0
    %1100 = vmatprep.subr.mxu0 0.0
    %1101 = vmatpush1.msra.mxu0 0.0
    %1102 = vmatprep.subr.mxu0 0.0
    %1103 = vmatpush1.msra.mxu0 0.0
    %1104 = vmatprep.subr.mxu0 0.0
    %1105 = vmatpush1.msra.mxu0 0.0
    %1106 = vmatprep.subr.mxu0 0.0
    %1107 = vmatpush1.msra.mxu0 0.0
    %1108 = vmatprep.subr.mxu0 0.0
    %1109 = vmatpush1.msra.mxu0 0.0
    %1110 = vmatprep.subr.mxu0 0.0
    %1111 = vmatpush1.msra.mxu0 0.0
    %1112 = vmatprep.subr.mxu0 0.0
    %1113 = vmatpush1.msra.mxu0 0.0
    %1114 = vmatprep.subr.mxu0 0.0
    %1115 = vmatpush1.msra.mxu0 0.0
    %1116 = vmatprep.subr.mxu0 0.0
    %1117 = vmatpush1.msra.mxu0 0.0
    %1118 = vmatprep.subr.mxu0 0.0
    %1119 = vmatpush1.msra.mxu0 0.0
    %1120 = vmatprep.subr.mxu0 0.0
    %1121 = vmatpush1.msra.mxu0 0.0
    %1122 = vmatprep.subr.mxu0 0.0
    %1123 = vmatpush1.msra.mxu0 0.0
    %1124 = vmatprep.subr.mxu0 0.0
    %1125 = vmatpush1.msra.mxu0 0.0
    %1126 = vmatprep.subr.mxu0 0.0
    %1127 = vmatpush1.msra.mxu0 0.0
    %1128 = vmatprep.subr.mxu0 0.0
    %1129 = vmatpush1.msra.mxu0 0.0
    %1130 = vmatprep.subr.mxu0 0.0
    %1131 = vmatpush1.msra.mxu0 0.0
    %1132 = vmatprep.subr.mxu0 0.0
    %1133 = vmatpush1.msra.mxu0 0.0
    %1134 = vmatprep.subr.mxu0 0.0
    %1135 = vmatpush1.msra.mxu0 0.0
    %1136 = vmatprep.subr.mxu0 0.0
    %1137 = vmatpush1.msra.mxu0 0.0
    %1138 = vmatprep.subr.mxu0 0.0
    %1139 = vmatpush1.msra.mxu0 0.0
    %1140 = vmatprep.subr.mxu0 0.0
    %1141 = vmatpush1.msra.mxu0 0.0
    %1142 = vmatprep.subr.mxu0 0.0
    %1143 = vmatpush1.msra.mxu0 0.0
    %1144 = vmatprep.subr.mxu0 0.0
    %1145 = vmatpush1.msra.mxu0 0.0
    %1146 = vmatprep.mubr.f32.mxu0 0.0
    %1147 = vmatmul.mubr.f32.gmra.mrb[0].mxu0 %v1077
    %v1148 = vpop.f32.mrb[0].mxu0
    %v1149 = vadd.f32 0.0, %v1148
    %v1150 = vpop.f32.mrb[0].mxu0
    %1151 = vmatprep.mubr.f32.mxu0 0.0
    %1152 = vmatmul.mubr.f32.gmra.mrb[0].mxu0 %v1080
    %v1153 = vpop.f32.mrb[0].mxu0
    %v1154 = vadd.f32 0.0, %v1153
    %v1155 = vpop.f32.mrb[0].mxu0
    %1156 = vdwg.mxu0
    %v1157 = vmul.f32 %v1149, %v1149
    %v1158 = vmul.f32 %v1154, %v1154
    %v1159 = vsel %vm303, %v1157, 0.0
    %1160 = vadd.xlane.f32.xlu0 %v1159
    %v1161 = vpop.xlane.xlu0 %1160
    %v1162 = vsel %vm303, %v1158, 0.0
    %1163 = vadd.xlane.f32.xlu0 %v1162
    %v1164 = vpop.xlane.xlu0 %1163
    %v1165 = vmul.f32 %v1161, %v501
    %v1166 = vmul.f32 %v1164, %v501
    %v1167 = vadd.f32 %v1165, 1e-05
    %v1168 = vadd.f32 %v1166, 1e-05
    %v1169 = vrsqrt.pop %v1167
    %v1170 = vrsqrt.pop %v1168
    %v1171 = vmul.f32 %v1149, %v1169
    %v1172 = vmul.f32 %v1154, %v1170
    %1175 = vrot.lane.b32.xlu0 %v1171, 24
    %v1176 = vpop.permute.xlu0 %1175
    %1177 = vrot.lane.b32.xlu0 %v1172, 24
    %v1178 = vpop.permute.xlu0 %1177
    %vm1181 = vcmask 261312
    %1182 = vst.msk [vmem:[#allocation2] sm:$0xff] %vm1181, %v1176
    %1183 = vst.msk [vmem:[#allocation2 + $0x8] sm:$0xff] %vm1181, %v1178
    %v1184 = vld [vmem:[#allocation2] sm:$0xff]
    %v1185 = vld [vmem:[#allocation2 + $0x8] sm:$0xff]
    %v1186 = vxor.u32 %v189, 2147483648
    %v1187 = vxor.u32 %v194, 2147483648
    %v1188 = vmul.f32 %v1186, 1.442695
    %v1189 = vpow.pop %v1188
    %v1190 = vmul.f32 %v1187, 1.442695
    %v1191 = vpow.pop %v1190
    %v1192 = vadd.f32 %v1189, 1.0
    %v1193 = vadd.f32 %v1191, 1.0
    %v1194 = vrcp.pop %v1192
    %v1195 = vmul.f32 1.0, %v1194
    %v1196 = vrcp.pop %v1193
    %v1197 = vmul.f32 1.0, %v1196
    %v1198 = vmul.f32 %v189, %v1195
    %v1199 = vmul.f32 %v194, %v1197
    %1202 = vrot.lane.b32.xlu0 %v1184, 96
    %v1203 = vpop.permute.xlu0 %1202
    %1204 = vrot.lane.b32.xlu0 %v1185, 96
    %v1205 = vpop.permute.xlu0 %1204
    %v1208 = vmul.f32 %v1198, %v1203
    %v1209 = vmul.f32 %v1199, %v1205
    %v1210 = vld [vmem:[#allocation12] sm:$0xff]
    %v1211 = vld [vmem:[#allocation12 + $0x8] sm:$0xff]
    %v1212 = vld [vmem:[#allocation12 + $0x10] sm:$0xff]
    %v1213 = vld [vmem:[#allocation12 + $0x18] sm:$0xff]
    %1216 = vrot.lane.b32.xlu0 %v1208, 32
    %v1217 = vpop.permute.xlu0 %1216
    %1218 = vrot.lane.b32.xlu0 %v1209, 32
    %v1219 = vpop.permute.xlu0 %1218
    %v1220 = vsel %vm115, %v1217, 0
    %v1222 = vsel %vm115, %v1219, 0
    %1224 = vmatprep.subr.mxu0 0.0
    %1225 = vmatpush1.msra.mxu0 %v1210
    %1226 = vmatprep.subr.mxu0 0.0
    %1227 = vmatpush1.msra.mxu0 %v1211
    %1228 = vmatprep.subr.mxu0 0.0
    %1229 = vmatpush1.msra.mxu0 %v1212
    %1230 = vmatprep.subr.mxu0 0.0
    %1231 = vmatpush1.msra.mxu0 %v1213
    %1232 = vmatprep.subr.mxu0 0.0
    %1233 = vmatpush1.msra.mxu0 0.0
    %1234 = vmatprep.subr.mxu0 0.0
    %1235 = vmatpush1.msra.mxu0 0.0
    %1236 = vmatprep.subr.mxu0 0.0
    %1237 = vmatpush1.msra.mxu0 0.0
    %1238 = vmatprep.subr.mxu0 0.0
    %1239 = vmatpush1.msra.mxu0 0.0
    %1240 = vmatprep.subr.mxu0 0.0
    %1241 = vmatpush1.msra.mxu0 0.0
    %1242 = vmatprep.subr.mxu0 0.0
    %1243 = vmatpush1.msra.mxu0 0.0
    %1244 = vmatprep.subr.mxu0 0.0
    %1245 = vmatpush1.msra.mxu0 0.0
    %1246 = vmatprep.subr.mxu0 0.0
    %1247 = vmatpush1.msra.mxu0 0.0
    %1248 = vmatprep.subr.mxu0 0.0
    %1249 = vmatpush1.msra.mxu0 0.0
    %1250 = vmatprep.subr.mxu0 0.0
    %1251 = vmatpush1.msra.mxu0 0.0
    %1252 = vmatprep.subr.mxu0 0.0
    %1253 = vmatpush1.msra.mxu0 0.0
    %1254 = vmatprep.subr.mxu0 0.0
    %1255 = vmatpush1.msra.mxu0 0.0
    %1256 = vmatprep.subr.mxu0 0.0
    %1257 = vmatpush1.msra.mxu0 0.0
    %1258 = vmatprep.subr.mxu0 0.0
    %1259 = vmatpush1.msra.mxu0 0.0
    %1260 = vmatprep.subr.mxu0 0.0
    %1261 = vmatpush1.msra.mxu0 0.0
    %1262 = vmatprep.subr.mxu0 0.0
    %1263 = vmatpush1.msra.mxu0 0.0
    %1264 = vmatprep.subr.mxu0 0.0
    %1265 = vmatpush1.msra.mxu0 0.0
    %1266 = vmatprep.subr.mxu0 0.0
    %1267 = vmatpush1.msra.mxu0 0.0
    %1268 = vmatprep.subr.mxu0 0.0
    %1269 = vmatpush1.msra.mxu0 0.0
    %1270 = vmatprep.subr.mxu0 0.0
    %1271 = vmatpush1.msra.mxu0 0.0
    %1272 = vmatprep.subr.mxu0 0.0
    %1273 = vmatpush1.msra.mxu0 0.0
    %1274 = vmatprep.subr.mxu0 0.0
    %1275 = vmatpush1.msra.mxu0 0.0
    %1276 = vmatprep.subr.mxu0 0.0
    %1277 = vmatpush1.msra.mxu0 0.0
    %1278 = vmatprep.subr.mxu0 0.0
    %1279 = vmatpush1.msra.mxu0 0.0
    %1280 = vmatprep.subr.mxu0 0.0
    %1281 = vmatpush1.msra.mxu0 0.0
    %1282 = vmatprep.subr.mxu0 0.0
    %1283 = vmatpush1.msra.mxu0 0.0
    %1284 = vmatprep.subr.mxu0 0.0
    %1285 = vmatpush1.msra.mxu0 0.0
    %1286 = vmatprep.subr.mxu0 0.0
    %1287 = vmatpush1.msra.mxu0 0.0
    %1288 = vmatprep.mubr.f32.mxu0 0.0
    %1289 = vmatmul.mubr.f32.gmra.mrb[0].mxu0 %v1220
    %v1290 = vpop.f32.mrb[0].mxu0
    %v1291 = vadd.f32 0.0, %v1290
    %v1292 = vpop.f32.mrb[0].mxu0
    %1293 = vmatprep.mubr.f32.mxu0 0.0
    %1294 = vmatmul.mubr.f32.gmra.mrb[0].mxu0 %v1222
    %v1295 = vpop.f32.mrb[0].mxu0
    %v1296 = vadd.f32 0.0, %v1295
    %v1297 = vpop.f32.mrb[0].mxu0
    %1298 = vdwg.mxu0
    %1299 = vst.msk [vmem:[#allocation14] sm:$0xff] %vm115, %v1291
    %1300 = vst.msk [vmem:[#allocation14 + $0x8] sm:$0xff] %vm115, %v1296
    // Predicated region
    $region54: #{multi_scale_retention.1} parent=1 // pred_check
      _
    $region55: #{multi_scale_retention.1} parent=1 // pred_check_branch
      %1302 = sbr.rel (0) target = $region57
    $region56: #{multi_scale_retention.1} parent=1 // pred_region
      %s1304 = ssub.s32 256, 256
      %1305 = vsyncadd [#allocation5], %s1304
      %s1306 = sshll.u32 [#allocation14], 4
      %s1307 = int_to_ptr.vmem [resolvable:$true] %s1306
      %1312 = dma.vmem_to_hbm [thread:$0]  %s1307, 256, %s7, [#allocation5], 128, 128, 8
    $region57: #{multi_scale_retention.1} parent=1 // pred_fallthru
      _
    // Predicated region
    $region58: #{multi_scale_retention.1} parent=1 // pred_check
      _
    $region59: #{multi_scale_retention.1} parent=1 // pred_check_branch
      %1314 = sbr.rel (0) target = $region61
    $region60: #{multi_scale_retention.1} parent=1 // pred_region
      %1315 = dma.done [#allocation5], 256
    $region61: #{multi_scale_retention.1} parent=1 // pred_fallthru
      _
    %1316 = vsyncpa [#allocation4], 1
    %1317 = vsyncpa [#allocation7], 1
    %1318 = vsyncpa [#allocation10], 1
    %1319 = vsyncpa [#allocation13], 1
    %1320 = vsyncpa [#allocation5], 1

</llo_original>
